<compile_context>
chip_gen: v7x
topology: tpu7x:2x2x1
jax: 0.10.0
libtpu: 0.0.40
codegen_flags: <defaults>
</compile_context>

<pallas_src>
import math

import jax
import jax.numpy as jnp
from jax import lax
from jax.experimental import pallas as pl
from jax.experimental.pallas import tpu as pltpu


_HMAX = 64           # widest channel count in SageRes (conv4 output)
_WROWS = 2 * _HMAX   # packed conv weight rows: [Wl ; Wr]
_OUT_CLASSES = 2

# (in_channels, out_channels) of the 7 SAGEConvs and the 3 Linears
_CONV_DIMS = [(3, 8), (8, 16), (16, 32), (32, 64), (64, 32), (32, 16), (16, 8)]
_LIN_DIMS = [(8, 32), (32, 16), (16, _OUT_CLASSES)]
_NUM_LAYERS = len(_CONV_DIMS) + len(_LIN_DIMS)   # 10


# ----------------------------- Pallas kernel --------------------------------
def _sage_res_kernel(x_ref, e_ref, w_ref, b_ref, out_ref):
    n = x_ref.shape[0]          # nodes per graph
    e = e_ref.shape[1]          # edges per graph

    # ---------------- normalize (per graph), matching SageRes.normalize ------
    x = x_ref[...].astype(jnp.float32)          # [N, 3]
    cx = x[:, 0:1]
    cy = x[:, 1:2]
    ar = x[:, 2:3]
    rotate = (jnp.max(cy) - jnp.min(cy)) > (jnp.max(cx) - jnp.min(cx))
    ct = jnp.cos(jnp.float32(math.pi / 2.0))    # ~ -4.37e-8, matches torch.cos(pi/2)
    st = jnp.sin(jnp.float32(math.pi / 2.0))    # 1.0
    rx = ct * cx - st * cy
    ry = st * cx + ct * cy
    cx = jnp.where(rotate, rx, cx)
    cy = jnp.where(rotate, ry, cy)
    cx = (cx - jnp.mean(cx)) / jnp.max(cx)
    cy = (cy - jnp.mean(cy)) / jnp.max(cy)
    ar = ar / jnp.max(ar)

    # scatter the 3 normalized features into a zero-padded [N, 64] buffer
    col = lax.broadcasted_iota(jnp.int32, (n, _HMAX), 1)
    h0 = jnp.where(col == 0, cx, jnp.where(col == 1, cy, jnp.where(col == 2, ar, 0.0)))

    # -------- build the row-normalized mean-aggregation operator A on-chip ----
    # A[i, j] = (#edges j->i) / in_degree(i); built via one-hot matmul (MXU), no scatter.
    edges = e_ref[...]                                        # [2, E] int32
    node_iota = lax.broadcasted_iota(jnp.int32, (n, e), 0)    # row index == node id
    src = jnp.broadcast_to(edges[0:1, :], (n, e))
    dst = jnp.broadcast_to(edges[1:2, :], (n, e))
    onehot_src = (src == node_iota).astype(jnp.float32)       # [N, E]
    onehot_dst = (dst == node_iota).astype(jnp.float32)       # [N, E]
    counts = lax.dot_general(onehot_dst, onehot_src,
                             dimension_numbers=(((1,), (1,)), ((), ())),
                             preferred_element_type=jnp.float32)   # [N, N]
    deg = jnp.sum(counts, axis=1, keepdims=True)
    adj = (counts / jnp.maximum(deg, 1.0)).astype(jnp.bfloat16)

    def bias(i):                          # [1, 64] f32 (zero beyond layer's out-channels)
        return b_ref[i:i + 1, :]

    def sage_conv(h, i):
        # h: [N, 64] f32 (zero beyond this layer's in-channels)
        agg = jnp.dot(adj, h.astype(jnp.bfloat16),
                      preferred_element_type=jnp.float32)     # mean over in-neighbors
        hcat = jnp.concatenate([agg, h], axis=1).astype(jnp.bfloat16)   # [N, 128]
        out = jnp.dot(hcat, w_ref[i], preferred_element_type=jnp.float32) + bias(i)
        return jnp.tanh(out)

    def linear(h, i):
        wv = w_ref[i][:_HMAX, :]                              # [64, 64] bf16
        return jnp.dot(h.astype(jnp.bfloat16), wv,
                       preferred_element_type=jnp.float32) + bias(i)

    # ------------------------------ SageRes forward ---------------------------
    x1 = sage_conv(h0, 0)          #  8 ch
    x2 = sage_conv(x1, 1)          # 16 ch
    x3 = sage_conv(x2, 2)          # 32 ch
    x4 = sage_conv(x3, 3)          # 64 ch
    h = sage_conv(x4, 4) + x3      # 32 ch  (residual)
    h = sage_conv(h, 5) + x2       # 16 ch  (residual)
    h = sage_conv(h, 6) + x1       #  8 ch  (residual)

    h = jnp.tanh(linear(h, 7))     # lin1: 8 -> 32
    h = jnp.tanh(linear(h, 8))     # lin2: 32 -> 16
    logits = linear(h, 9)[:, :_OUT_CLASSES]                   # lin_last: 16 -> 2

    # softmax over the class axis (dim=1)
    m = jnp.max(logits, axis=1, keepdims=True)
    ex = jnp.exp(logits - m)
    out_ref[...] = ex / jnp.sum(ex, axis=1, keepdims=True)


# ------------------------------ JAX glue -------------------------------------
def init_params(key):
    def linear_init(k, fan_in, fan_out, with_bias=True):
        k1, k2 = jax.random.split(k)
        bound = 1.0 / jnp.sqrt(jnp.float32(fan_in))
        w = jax.random.uniform(k1, (fan_in, fan_out), jnp.float32, -bound, bound)
        b = (jax.random.uniform(k2, (fan_out,), jnp.float32, -bound, bound)
             if with_bias else None)
        return w, b

    keys = jax.random.split(key, 2 * len(_CONV_DIMS) + len(_LIN_DIMS))
    convs = []
    for i, (fi, fo) in enumerate(_CONV_DIMS):
        wl, bl = linear_init(keys[2 * i], fi, fo, with_bias=True)    # lin_l (aggregated)
        wr, _ = linear_init(keys[2 * i + 1], fi, fo, with_bias=False)  # lin_r (root)
        convs.append((wl, bl, wr))
    lins = []
    for j, (fi, fo) in enumerate(_LIN_DIMS):
        w, b = linear_init(keys[2 * len(_CONV_DIMS) + j], fi, fo, with_bias=True)
        lins.append((w, b))
    return convs, lins


def pack_params(convs, lins):
    """One-time packing: all weights into one bf16 slab, all biases into one f32 slab."""
    w = jnp.zeros((_NUM_LAYERS, _WROWS, _HMAX), jnp.float32)
    b = jnp.zeros((16, _HMAX), jnp.float32)
    for i, (wl, bl, wr) in enumerate(convs):
        fi, fo = wl.shape
        w = w.at[i, :fi, :fo].set(wl)                     # lin_l rows [0:fi)
        w = w.at[i, _HMAX:_HMAX + fi, :fo].set(wr)        # lin_r rows [64:64+fi)
        b = b.at[i, :fo].set(bl)
    for j, (wj, bj) in enumerate(lins):
        fi, fo = wj.shape
        w = w.at[len(convs) + j, :fi, :fo].set(wj)
        b = b.at[len(convs) + j, :fo].set(bj)
    return w.astype(jnp.bfloat16), b


def sage_res_forward(x, edge_index, packed_w, packed_b):
    g, n, _ = x.shape
    num_edges = edge_index.shape[2]
    return pl.pallas_call(
        _sage_res_kernel,
        out_shape=jax.ShapeDtypeStruct((g, n, _OUT_CLASSES), jnp.float32),
        grid_spec=pltpu.PrefetchScalarGridSpec(
            num_scalar_prefetch=0,
            grid=(g,),
            in_specs=[
                pl.BlockSpec((None, n, 3), lambda i: (i, 0, 0)),             # per-graph x
                pl.BlockSpec((None, 2, num_edges), lambda i: (i, 0, 0)),     # per-graph edges
                pl.BlockSpec((_NUM_LAYERS, _WROWS, _HMAX), lambda i: (0, 0, 0)),  # weights (resident)
                pl.BlockSpec((16, _HMAX), lambda i: (0, 0)),                 # biases (resident)
            ],
            out_specs=pl.BlockSpec((None, n, _OUT_CLASSES), lambda i: (i, 0, 0)),
        ),
        compiler_params=pltpu.CompilerParams(
            dimension_semantics=("parallel",),   # shard graphs across TCs on v7x
        ),
    )(x, edge_index, packed_w, packed_b)


# -------------------------------- main ---------------------------------------
if __name__ == "__main__":
    NUM_GRAPHS = 4
    NUM_NODES = 16
    NUM_EDGES = 48

    key = jax.random.PRNGKey(0)
    k_coords, k_area, k_edges, k_params = jax.random.split(key, 4)

    coords = jax.random.uniform(k_coords, (NUM_GRAPHS, NUM_NODES, 2), jnp.float32, 0.1, 10.0)
    areas = jax.random.uniform(k_area, (NUM_GRAPHS, NUM_NODES, 1), jnp.float32, 0.5, 5.0)
    x = jnp.concatenate([coords, areas], axis=-1)                      # [G, N, 3]
    edge_index = jax.random.randint(
        k_edges, (NUM_GRAPHS, 2, NUM_EDGES), 0, NUM_NODES, jnp.int32)  # [G, 2, E]

    convs, lins = init_params(k_params)
    packed_w, packed_b = pack_params(convs, lins)   # hoisted one-time parameter packing

    fwd = jax.jit(sage_res_forward)
    out = jax.block_until_ready(fwd(x, edge_index, packed_w, packed_b))

    assert out.shape == (NUM_GRAPHS, NUM_NODES, _OUT_CLASSES)
    assert bool(jnp.all(jnp.isfinite(out)))
    # rows of the softmax output must sum to 1
    assert bool(jnp.allclose(jnp.sum(out, axis=-1), 1.0, atol=1e-5))
    print("KERNEL_OK")
</pallas_src>

<mosaic_0001>
module attributes {stable_mosaic.version = 11 : i64} {
  func.func @_sage_res_kernel(%arg0: i32, %arg1: memref<1x16x3xf32, #tpu.memory_space<vmem>>, %arg2: memref<1x2x48xi32, #tpu.memory_space<vmem>>, %arg3: memref<10x128x64xbf16, #tpu.memory_space<vmem>>, %arg4: memref<16x64xf32, #tpu.memory_space<vmem>>, %arg5: memref<1x16x2xf32, #tpu.memory_space<vmem>>) attributes {dimension_semantics = [#tpu.dimension_semantics<parallel>], iteration_bounds = array<i64: 4>, scalar_prefetch = 0 : i64, scratch_operands = 0 : i64, tpu.core_type = #tpu.core_type<tc>, window_params = [{transform_indices = @transform_0, window_bounds = array<i64: 1, 16, 3>}, {transform_indices = @transform_1, window_bounds = array<i64: 1, 2, 48>}, {pipeline_mode = #tpu.pipeline_mode<synchronous>, transform_indices = @transform_2, window_bounds = array<i64: 10, 128, 64>}, {pipeline_mode = #tpu.pipeline_mode<synchronous>, transform_indices = @transform_3, window_bounds = array<i64: 16, 64>}, {transform_indices = @transform_4, window_bounds = array<i64: 1, 16, 2>}]} {
    %c0 = arith.constant 0 : index
    %c0_0 = arith.constant 0 : index
    %c0_1 = arith.constant 0 : index
    %0 = vector.load %arg1[%c0, %c0_0, %c0_1] : memref<1x16x3xf32, #tpu.memory_space<vmem>>, vector<1x16x3xf32>
    %1 = vector.shape_cast %0 : vector<1x16x3xf32> to vector<16x3xf32>
    %2 = vector.extract_strided_slice %1 {offsets = [0, 0], sizes = [16, 1], strides = [1, 1]} : vector<16x3xf32> to vector<16x1xf32>
    %3 = vector.extract_strided_slice %1 {offsets = [0, 1], sizes = [16, 1], strides = [1, 1]} : vector<16x3xf32> to vector<16x1xf32>
    %4 = vector.extract_strided_slice %1 {offsets = [0, 2], sizes = [16, 1], strides = [1, 1]} : vector<16x3xf32> to vector<16x1xf32>
    %5 = vector.shape_cast %3 : vector<16x1xf32> to vector<1x16x1xf32>
    %cst = arith.constant dense<0xFF800000> : vector<1xf32>
    %6 = vector.multi_reduction <maximumf>, %5, %cst [1, 2] : vector<1x16x1xf32> to vector<1xf32>
    %7 = vector.shape_cast %6 : vector<1xf32> to vector<1x1x1xf32>
    %8 = vector.extract %7[0, 0, 0] : f32 from vector<1x1x1xf32>
    %9 = vector.shape_cast %3 : vector<16x1xf32> to vector<1x16x1xf32>
    %cst_2 = arith.constant dense<0x7F800000> : vector<1xf32>
    %10 = vector.multi_reduction <minimumf>, %9, %cst_2 [1, 2] : vector<1x16x1xf32> to vector<1xf32>
    %11 = vector.shape_cast %10 : vector<1xf32> to vector<1x1x1xf32>
    %12 = vector.extract %11[0, 0, 0] : f32 from vector<1x1x1xf32>
    %13 = arith.subf %8, %12 : f32
    %14 = vector.shape_cast %2 : vector<16x1xf32> to vector<1x16x1xf32>
    %cst_3 = arith.constant dense<0xFF800000> : vector<1xf32>
    %15 = vector.multi_reduction <maximumf>, %14, %cst_3 [1, 2] : vector<1x16x1xf32> to vector<1xf32>
    %16 = vector.shape_cast %15 : vector<1xf32> to vector<1x1x1xf32>
    %17 = vector.extract %16[0, 0, 0] : f32 from vector<1x1x1xf32>
    %18 = vector.shape_cast %2 : vector<16x1xf32> to vector<1x16x1xf32>
    %cst_4 = arith.constant dense<0x7F800000> : vector<1xf32>
    %19 = vector.multi_reduction <minimumf>, %18, %cst_4 [1, 2] : vector<1x16x1xf32> to vector<1xf32>
    %20 = vector.shape_cast %19 : vector<1xf32> to vector<1x1x1xf32>
    %21 = vector.extract %20[0, 0, 0] : f32 from vector<1x1x1xf32>
    %22 = arith.subf %17, %21 : f32
    %23 = arith.cmpf ogt, %13, %22 : f32
    %cst_5 = arith.constant 1.57079637 : f32
    %24 = math.cos %cst_5 : f32
    %cst_6 = arith.constant 1.57079637 : f32
    %25 = math.sin %cst_6 : f32
    %26 = vector.broadcast %24 : f32 to vector<16x1xf32>
    %27 = arith.mulf %26, %2 : vector<16x1xf32>
    %28 = vector.broadcast %25 : f32 to vector<16x1xf32>
    %29 = arith.mulf %28, %3 : vector<16x1xf32>
    %30 = arith.subf %27, %29 : vector<16x1xf32>
    %31 = vector.broadcast %25 : f32 to vector<16x1xf32>
    %32 = arith.mulf %31, %2 : vector<16x1xf32>
    %33 = vector.broadcast %24 : f32 to vector<16x1xf32>
    %34 = arith.mulf %33, %3 : vector<16x1xf32>
    %35 = arith.addf %32, %34 : vector<16x1xf32>
    %36 = arith.select %23, %30, %2 : vector<16x1xf32>
    %37 = arith.select %23, %35, %3 : vector<16x1xf32>
    %38 = vector.shape_cast %36 : vector<16x1xf32> to vector<1x16x1xf32>
    %cst_7 = arith.constant dense<0.000000e+00> : vector<1xf32>
    %39 = vector.multi_reduction <add>, %38, %cst_7 [1, 2] : vector<1x16x1xf32> to vector<1xf32>
    %40 = vector.shape_cast %39 : vector<1xf32> to vector<1x1x1xf32>
    %41 = vector.extract %40[0, 0, 0] : f32 from vector<1x1x1xf32>
    %cst_8 = arith.constant 1.600000e+01 : f32
    %42 = arith.divf %41, %cst_8 : f32
    %43 = vector.broadcast %42 : f32 to vector<16x1xf32>
    %44 = arith.subf %36, %43 : vector<16x1xf32>
    %45 = vector.shape_cast %36 : vector<16x1xf32> to vector<1x16x1xf32>
    %cst_9 = arith.constant dense<0xFF800000> : vector<1xf32>
    %46 = vector.multi_reduction <maximumf>, %45, %cst_9 [1, 2] : vector<1x16x1xf32> to vector<1xf32>
    %47 = vector.shape_cast %46 : vector<1xf32> to vector<1x1x1xf32>
    %48 = vector.extract %47[0, 0, 0] : f32 from vector<1x1x1xf32>
    %49 = vector.broadcast %48 : f32 to vector<16x1xf32>
    %50 = arith.divf %44, %49 : vector<16x1xf32>
    %51 = vector.shape_cast %37 : vector<16x1xf32> to vector<1x16x1xf32>
    %cst_10 = arith.constant dense<0.000000e+00> : vector<1xf32>
    %52 = vector.multi_reduction <add>, %51, %cst_10 [1, 2] : vector<1x16x1xf32> to vector<1xf32>
    %53 = vector.shape_cast %52 : vector<1xf32> to vector<1x1x1xf32>
    %54 = vector.extract %53[0, 0, 0] : f32 from vector<1x1x1xf32>
    %cst_11 = arith.constant 1.600000e+01 : f32
    %55 = arith.divf %54, %cst_11 : f32
    %56 = vector.broadcast %55 : f32 to vector<16x1xf32>
    %57 = arith.subf %37, %56 : vector<16x1xf32>
    %58 = vector.shape_cast %37 : vector<16x1xf32> to vector<1x16x1xf32>
    %cst_12 = arith.constant dense<0xFF800000> : vector<1xf32>
    %59 = vector.multi_reduction <maximumf>, %58, %cst_12 [1, 2] : vector<1x16x1xf32> to vector<1xf32>
    %60 = vector.shape_cast %59 : vector<1xf32> to vector<1x1x1xf32>
    %61 = vector.extract %60[0, 0, 0] : f32 from vector<1x1x1xf32>
    %62 = vector.broadcast %61 : f32 to vector<16x1xf32>
    %63 = arith.divf %57, %62 : vector<16x1xf32>
    %64 = vector.shape_cast %4 : vector<16x1xf32> to vector<1x16x1xf32>
    %cst_13 = arith.constant dense<0xFF800000> : vector<1xf32>
    %65 = vector.multi_reduction <maximumf>, %64, %cst_13 [1, 2] : vector<1x16x1xf32> to vector<1xf32>
    %66 = vector.shape_cast %65 : vector<1xf32> to vector<1x1x1xf32>
    %67 = vector.extract %66[0, 0, 0] : f32 from vector<1x1x1xf32>
    %68 = vector.broadcast %67 : f32 to vector<16x1xf32>
    %69 = arith.divf %4, %68 : vector<16x1xf32>
    %70 = tpu.iota {dimensions = array<i32: 1>} : vector<16x64xi32>
    %c0_i32 = arith.constant 0 : i32
    %71 = vector.broadcast %c0_i32 : i32 to vector<16x64xi32>
    %72 = arith.cmpi eq, %70, %71 : vector<16x64xi32>
    %c1_i32 = arith.constant 1 : i32
    %73 = vector.broadcast %c1_i32 : i32 to vector<16x64xi32>
    %74 = arith.cmpi eq, %70, %73 : vector<16x64xi32>
    %c2_i32 = arith.constant 2 : i32
    %75 = vector.broadcast %c2_i32 : i32 to vector<16x64xi32>
    %76 = arith.cmpi eq, %70, %75 : vector<16x64xi32>
    %cst_14 = arith.constant 0.000000e+00 : f32
    %77 = vector.shape_cast %69 : vector<16x1xf32> to vector<16x1xf32>
    %78 = vector.broadcast %77 : vector<16x1xf32> to vector<16x64xf32>
    %79 = vector.broadcast %cst_14 : f32 to vector<16x64xf32>
    %80 = arith.select %76, %78, %79 : vector<16x64xi1>, vector<16x64xf32>
    %81 = vector.shape_cast %63 : vector<16x1xf32> to vector<16x1xf32>
    %82 = vector.broadcast %81 : vector<16x1xf32> to vector<16x64xf32>
    %83 = arith.select %74, %82, %80 : vector<16x64xi1>, vector<16x64xf32>
    %84 = vector.shape_cast %50 : vector<16x1xf32> to vector<16x1xf32>
    %85 = vector.broadcast %84 : vector<16x1xf32> to vector<16x64xf32>
    %86 = arith.select %72, %85, %83 : vector<16x64xi1>, vector<16x64xf32>
    %c0_15 = arith.constant 0 : index
    %c0_16 = arith.constant 0 : index
    %c0_17 = arith.constant 0 : index
    %87 = vector.load %arg2[%c0_15, %c0_16, %c0_17] : memref<1x2x48xi32, #tpu.memory_space<vmem>>, vector<1x2x48xi32>
    %88 = vector.shape_cast %87 : vector<1x2x48xi32> to vector<2x48xi32>
    %89 = tpu.iota {dimensions = array<i32: 0>} : vector<16x48xi32>
    %90 = vector.extract_strided_slice %88 {offsets = [0, 0], sizes = [1, 48], strides = [1, 1]} : vector<2x48xi32> to vector<1x48xi32>
    %91 = vector.shape_cast %90 : vector<1x48xi32> to vector<1x48xi32>
    %92 = vector.broadcast %91 : vector<1x48xi32> to vector<16x48xi32>
    %93 = vector.extract_strided_slice %88 {offsets = [1, 0], sizes = [1, 48], strides = [1, 1]} : vector<2x48xi32> to vector<1x48xi32>
    %94 = vector.shape_cast %93 : vector<1x48xi32> to vector<1x48xi32>
    %95 = vector.broadcast %94 : vector<1x48xi32> to vector<16x48xi32>
    %96 = arith.cmpi eq, %92, %89 : vector<16x48xi32>
    %97 = arith.extui %96 : vector<16x48xi1> to vector<16x48xi32>
    %98 = arith.sitofp %97 : vector<16x48xi32> to vector<16x48xf32>
    %99 = arith.cmpi eq, %95, %89 : vector<16x48xi32>
    %100 = arith.extui %99 : vector<16x48xi1> to vector<16x48xi32>
    %101 = arith.sitofp %100 : vector<16x48xi32> to vector<16x48xf32>
    %cst_18 = arith.constant dense<0.000000e+00> : vector<16x16xf32>
    %102 = tpu.matmul %101, %98, %cst_18 {dimension_numbers = #tpu.dot_dimension_numbers<[1], [1], [0], [0], [0, 0, 1, 0], [], []>} : vector<16x48xf32>, vector<16x48xf32>, vector<16x16xf32> -> vector<16x16xf32>
    %cst_19 = arith.constant dense<0.000000e+00> : vector<16xf32>
    %103 = vector.multi_reduction <add>, %102, %cst_19 [1] : vector<16x16xf32> to vector<16xf32>
    %104 = vector.shape_cast %103 : vector<16xf32> to vector<16x1xf32>
    %cst_20 = arith.constant 1.000000e+00 : f32
    %105 = vector.broadcast %cst_20 : f32 to vector<16x1xf32>
    %106 = arith.maximumf %104, %105 : vector<16x1xf32>
    %107 = vector.broadcast %106 : vector<16x1xf32> to vector<16x16xf32>
    %108 = arith.divf %102, %107 : vector<16x16xf32>
    %109 = arith.truncf %108 : vector<16x16xf32> to vector<16x16xbf16>
    %110 = arith.truncf %86 : vector<16x64xf32> to vector<16x64xbf16>
    %cst_21 = arith.constant dense<0.000000e+00> : vector<16x64xf32>
    %111 = tpu.matmul %109, %110, %cst_21 {dimension_numbers = #tpu.dot_dimension_numbers<[1], [0], [0], [1], [0, 0, 1, 1], [], []>} : vector<16x16xbf16>, vector<16x64xbf16>, vector<16x64xf32> -> vector<16x64xf32>
    %112 = tpu.concatenate %111, %86 in 1 : vector<16x64xf32>, vector<16x64xf32> -> vector<16x128xf32>
    %113 = arith.truncf %112 : vector<16x128xf32> to vector<16x128xbf16>
    %c0_22 = arith.constant 0 : index
    %c0_23 = arith.constant 0 : index
    %c0_24 = arith.constant 0 : index
    %114 = vector.load %arg3[%c0_22, %c0_23, %c0_24] : memref<10x128x64xbf16, #tpu.memory_space<vmem>>, vector<1x128x64xbf16>
    %115 = vector.shape_cast %114 : vector<1x128x64xbf16> to vector<128x64xbf16>
    %cst_25 = arith.constant dense<0.000000e+00> : vector<16x64xf32>
    %116 = tpu.matmul %113, %115, %cst_25 {dimension_numbers = #tpu.dot_dimension_numbers<[1], [0], [0], [1], [0, 0, 1, 1], [], []>} : vector<16x128xbf16>, vector<128x64xbf16>, vector<16x64xf32> -> vector<16x64xf32>
    %c0_26 = arith.constant 0 : index
    %c0_27 = arith.constant 0 : index
    %117 = vector.load %arg4[%c0_26, %c0_27] : memref<16x64xf32, #tpu.memory_space<vmem>>, vector<1x64xf32>
    %118 = vector.broadcast %117 : vector<1x64xf32> to vector<16x64xf32>
    %119 = arith.addf %116, %118 : vector<16x64xf32>
    %120 = math.tanh %119 : vector<16x64xf32>
    %121 = arith.truncf %120 : vector<16x64xf32> to vector<16x64xbf16>
    %cst_28 = arith.constant dense<0.000000e+00> : vector<16x64xf32>
    %122 = tpu.matmul %109, %121, %cst_28 {dimension_numbers = #tpu.dot_dimension_numbers<[1], [0], [0], [1], [0, 0, 1, 1], [], []>} : vector<16x16xbf16>, vector<16x64xbf16>, vector<16x64xf32> -> vector<16x64xf32>
    %123 = tpu.concatenate %122, %120 in 1 : vector<16x64xf32>, vector<16x64xf32> -> vector<16x128xf32>
    %124 = arith.truncf %123 : vector<16x128xf32> to vector<16x128xbf16>
    %c1 = arith.constant 1 : index
    %c0_29 = arith.constant 0 : index
    %c0_30 = arith.constant 0 : index
    %125 = vector.load %arg3[%c1, %c0_29, %c0_30] : memref<10x128x64xbf16, #tpu.memory_space<vmem>>, vector<1x128x64xbf16>
    %126 = vector.shape_cast %125 : vector<1x128x64xbf16> to vector<128x64xbf16>
    %cst_31 = arith.constant dense<0.000000e+00> : vector<16x64xf32>
    %127 = tpu.matmul %124, %126, %cst_31 {dimension_numbers = #tpu.dot_dimension_numbers<[1], [0], [0], [1], [0, 0, 1, 1], [], []>} : vector<16x128xbf16>, vector<128x64xbf16>, vector<16x64xf32> -> vector<16x64xf32>
    %c1_32 = arith.constant 1 : index
    %c0_33 = arith.constant 0 : index
    %128 = vector.load %arg4[%c1_32, %c0_33] : memref<16x64xf32, #tpu.memory_space<vmem>>, vector<1x64xf32>
    %129 = vector.broadcast %128 : vector<1x64xf32> to vector<16x64xf32>
    %130 = arith.addf %127, %129 : vector<16x64xf32>
    %131 = math.tanh %130 : vector<16x64xf32>
    %132 = arith.truncf %131 : vector<16x64xf32> to vector<16x64xbf16>
    %cst_34 = arith.constant dense<0.000000e+00> : vector<16x64xf32>
    %133 = tpu.matmul %109, %132, %cst_34 {dimension_numbers = #tpu.dot_dimension_numbers<[1], [0], [0], [1], [0, 0, 1, 1], [], []>} : vector<16x16xbf16>, vector<16x64xbf16>, vector<16x64xf32> -> vector<16x64xf32>
    %134 = tpu.concatenate %133, %131 in 1 : vector<16x64xf32>, vector<16x64xf32> -> vector<16x128xf32>
    %135 = arith.truncf %134 : vector<16x128xf32> to vector<16x128xbf16>
    %c2 = arith.constant 2 : index
    %c0_35 = arith.constant 0 : index
    %c0_36 = arith.constant 0 : index
    %136 = vector.load %arg3[%c2, %c0_35, %c0_36] : memref<10x128x64xbf16, #tpu.memory_space<vmem>>, vector<1x128x64xbf16>
    %137 = vector.shape_cast %136 : vector<1x128x64xbf16> to vector<128x64xbf16>
    %cst_37 = arith.constant dense<0.000000e+00> : vector<16x64xf32>
    %138 = tpu.matmul %135, %137, %cst_37 {dimension_numbers = #tpu.dot_dimension_numbers<[1], [0], [0], [1], [0, 0, 1, 1], [], []>} : vector<16x128xbf16>, vector<128x64xbf16>, vector<16x64xf32> -> vector<16x64xf32>
    %c2_38 = arith.constant 2 : index
    %c0_39 = arith.constant 0 : index
    %139 = vector.load %arg4[%c2_38, %c0_39] : memref<16x64xf32, #tpu.memory_space<vmem>>, vector<1x64xf32>
    %140 = vector.broadcast %139 : vector<1x64xf32> to vector<16x64xf32>
    %141 = arith.addf %138, %140 : vector<16x64xf32>
    %142 = math.tanh %141 : vector<16x64xf32>
    %143 = arith.truncf %142 : vector<16x64xf32> to vector<16x64xbf16>
    %cst_40 = arith.constant dense<0.000000e+00> : vector<16x64xf32>
    %144 = tpu.matmul %109, %143, %cst_40 {dimension_numbers = #tpu.dot_dimension_numbers<[1], [0], [0], [1], [0, 0, 1, 1], [], []>} : vector<16x16xbf16>, vector<16x64xbf16>, vector<16x64xf32> -> vector<16x64xf32>
    %145 = tpu.concatenate %144, %142 in 1 : vector<16x64xf32>, vector<16x64xf32> -> vector<16x128xf32>
    %146 = arith.truncf %145 : vector<16x128xf32> to vector<16x128xbf16>
    %c3 = arith.constant 3 : index
    %c0_41 = arith.constant 0 : index
    %c0_42 = arith.constant 0 : index
    %147 = vector.load %arg3[%c3, %c0_41, %c0_42] : memref<10x128x64xbf16, #tpu.memory_space<vmem>>, vector<1x128x64xbf16>
    %148 = vector.shape_cast %147 : vector<1x128x64xbf16> to vector<128x64xbf16>
    %cst_43 = arith.constant dense<0.000000e+00> : vector<16x64xf32>
    %149 = tpu.matmul %146, %148, %cst_43 {dimension_numbers = #tpu.dot_dimension_numbers<[1], [0], [0], [1], [0, 0, 1, 1], [], []>} : vector<16x128xbf16>, vector<128x64xbf16>, vector<16x64xf32> -> vector<16x64xf32>
    %c3_44 = arith.constant 3 : index
    %c0_45 = arith.constant 0 : index
    %150 = vector.load %arg4[%c3_44, %c0_45] : memref<16x64xf32, #tpu.memory_space<vmem>>, vector<1x64xf32>
    %151 = vector.broadcast %150 : vector<1x64xf32> to vector<16x64xf32>
    %152 = arith.addf %149, %151 : vector<16x64xf32>
    %153 = math.tanh %152 : vector<16x64xf32>
    %154 = arith.truncf %153 : vector<16x64xf32> to vector<16x64xbf16>
    %cst_46 = arith.constant dense<0.000000e+00> : vector<16x64xf32>
    %155 = tpu.matmul %109, %154, %cst_46 {dimension_numbers = #tpu.dot_dimension_numbers<[1], [0], [0], [1], [0, 0, 1, 1], [], []>} : vector<16x16xbf16>, vector<16x64xbf16>, vector<16x64xf32> -> vector<16x64xf32>
    %156 = tpu.concatenate %155, %153 in 1 : vector<16x64xf32>, vector<16x64xf32> -> vector<16x128xf32>
    %157 = arith.truncf %156 : vector<16x128xf32> to vector<16x128xbf16>
    %c4 = arith.constant 4 : index
    %c0_47 = arith.constant 0 : index
    %c0_48 = arith.constant 0 : index
    %158 = vector.load %arg3[%c4, %c0_47, %c0_48] : memref<10x128x64xbf16, #tpu.memory_space<vmem>>, vector<1x128x64xbf16>
    %159 = vector.shape_cast %158 : vector<1x128x64xbf16> to vector<128x64xbf16>
    %cst_49 = arith.constant dense<0.000000e+00> : vector<16x64xf32>
    %160 = tpu.matmul %157, %159, %cst_49 {dimension_numbers = #tpu.dot_dimension_numbers<[1], [0], [0], [1], [0, 0, 1, 1], [], []>} : vector<16x128xbf16>, vector<128x64xbf16>, vector<16x64xf32> -> vector<16x64xf32>
    %c4_50 = arith.constant 4 : index
    %c0_51 = arith.constant 0 : index
    %161 = vector.load %arg4[%c4_50, %c0_51] : memref<16x64xf32, #tpu.memory_space<vmem>>, vector<1x64xf32>
    %162 = vector.broadcast %161 : vector<1x64xf32> to vector<16x64xf32>
    %163 = arith.addf %160, %162 : vector<16x64xf32>
    %164 = math.tanh %163 : vector<16x64xf32>
    %165 = arith.addf %164, %142 : vector<16x64xf32>
    %166 = arith.truncf %165 : vector<16x64xf32> to vector<16x64xbf16>
    %cst_52 = arith.constant dense<0.000000e+00> : vector<16x64xf32>
    %167 = tpu.matmul %109, %166, %cst_52 {dimension_numbers = #tpu.dot_dimension_numbers<[1], [0], [0], [1], [0, 0, 1, 1], [], []>} : vector<16x16xbf16>, vector<16x64xbf16>, vector<16x64xf32> -> vector<16x64xf32>
    %168 = tpu.concatenate %167, %165 in 1 : vector<16x64xf32>, vector<16x64xf32> -> vector<16x128xf32>
    %169 = arith.truncf %168 : vector<16x128xf32> to vector<16x128xbf16>
    %c5 = arith.constant 5 : index
    %c0_53 = arith.constant 0 : index
    %c0_54 = arith.constant 0 : index
    %170 = vector.load %arg3[%c5, %c0_53, %c0_54] : memref<10x128x64xbf16, #tpu.memory_space<vmem>>, vector<1x128x64xbf16>
    %171 = vector.shape_cast %170 : vector<1x128x64xbf16> to vector<128x64xbf16>
    %cst_55 = arith.constant dense<0.000000e+00> : vector<16x64xf32>
    %172 = tpu.matmul %169, %171, %cst_55 {dimension_numbers = #tpu.dot_dimension_numbers<[1], [0], [0], [1], [0, 0, 1, 1], [], []>} : vector<16x128xbf16>, vector<128x64xbf16>, vector<16x64xf32> -> vector<16x64xf32>
    %c5_56 = arith.constant 5 : index
    %c0_57 = arith.constant 0 : index
    %173 = vector.load %arg4[%c5_56, %c0_57] : memref<16x64xf32, #tpu.memory_space<vmem>>, vector<1x64xf32>
    %174 = vector.broadcast %173 : vector<1x64xf32> to vector<16x64xf32>
    %175 = arith.addf %172, %174 : vector<16x64xf32>
    %176 = math.tanh %175 : vector<16x64xf32>
    %177 = arith.addf %176, %131 : vector<16x64xf32>
    %178 = arith.truncf %177 : vector<16x64xf32> to vector<16x64xbf16>
    %cst_58 = arith.constant dense<0.000000e+00> : vector<16x64xf32>
    %179 = tpu.matmul %109, %178, %cst_58 {dimension_numbers = #tpu.dot_dimension_numbers<[1], [0], [0], [1], [0, 0, 1, 1], [], []>} : vector<16x16xbf16>, vector<16x64xbf16>, vector<16x64xf32> -> vector<16x64xf32>
    %180 = tpu.concatenate %179, %177 in 1 : vector<16x64xf32>, vector<16x64xf32> -> vector<16x128xf32>
    %181 = arith.truncf %180 : vector<16x128xf32> to vector<16x128xbf16>
    %c6 = arith.constant 6 : index
    %c0_59 = arith.constant 0 : index
    %c0_60 = arith.constant 0 : index
    %182 = vector.load %arg3[%c6, %c0_59, %c0_60] : memref<10x128x64xbf16, #tpu.memory_space<vmem>>, vector<1x128x64xbf16>
    %183 = vector.shape_cast %182 : vector<1x128x64xbf16> to vector<128x64xbf16>
    %cst_61 = arith.constant dense<0.000000e+00> : vector<16x64xf32>
    %184 = tpu.matmul %181, %183, %cst_61 {dimension_numbers = #tpu.dot_dimension_numbers<[1], [0], [0], [1], [0, 0, 1, 1], [], []>} : vector<16x128xbf16>, vector<128x64xbf16>, vector<16x64xf32> -> vector<16x64xf32>
    %c6_62 = arith.constant 6 : index
    %c0_63 = arith.constant 0 : index
    %185 = vector.load %arg4[%c6_62, %c0_63] : memref<16x64xf32, #tpu.memory_space<vmem>>, vector<1x64xf32>
    %186 = vector.broadcast %185 : vector<1x64xf32> to vector<16x64xf32>
    %187 = arith.addf %184, %186 : vector<16x64xf32>
    %188 = math.tanh %187 : vector<16x64xf32>
    %189 = arith.addf %188, %120 : vector<16x64xf32>
    %c7 = arith.constant 7 : index
    %c0_64 = arith.constant 0 : index
    %c0_65 = arith.constant 0 : index
    %190 = vector.load %arg3[%c7, %c0_64, %c0_65] : memref<10x128x64xbf16, #tpu.memory_space<vmem>>, vector<1x128x64xbf16>
    %191 = vector.shape_cast %190 : vector<1x128x64xbf16> to vector<128x64xbf16>
    %192 = vector.extract_strided_slice %191 {offsets = [0, 0], sizes = [64, 64], strides = [1, 1]} : vector<128x64xbf16> to vector<64x64xbf16>
    %193 = arith.truncf %189 : vector<16x64xf32> to vector<16x64xbf16>
    %cst_66 = arith.constant dense<0.000000e+00> : vector<16x64xf32>
    %194 = tpu.matmul %193, %192, %cst_66 {dimension_numbers = #tpu.dot_dimension_numbers<[1], [0], [0], [1], [0, 0, 1, 1], [], []>} : vector<16x64xbf16>, vector<64x64xbf16>, vector<16x64xf32> -> vector<16x64xf32>
    %c7_67 = arith.constant 7 : index
    %c0_68 = arith.constant 0 : index
    %195 = vector.load %arg4[%c7_67, %c0_68] : memref<16x64xf32, #tpu.memory_space<vmem>>, vector<1x64xf32>
    %196 = vector.broadcast %195 : vector<1x64xf32> to vector<16x64xf32>
    %197 = arith.addf %194, %196 : vector<16x64xf32>
    %198 = math.tanh %197 : vector<16x64xf32>
    %c8 = arith.constant 8 : index
    %c0_69 = arith.constant 0 : index
    %c0_70 = arith.constant 0 : index
    %199 = vector.load %arg3[%c8, %c0_69, %c0_70] : memref<10x128x64xbf16, #tpu.memory_space<vmem>>, vector<1x128x64xbf16>
    %200 = vector.shape_cast %199 : vector<1x128x64xbf16> to vector<128x64xbf16>
    %201 = vector.extract_strided_slice %200 {offsets = [0, 0], sizes = [64, 64], strides = [1, 1]} : vector<128x64xbf16> to vector<64x64xbf16>
    %202 = arith.truncf %198 : vector<16x64xf32> to vector<16x64xbf16>
    %cst_71 = arith.constant dense<0.000000e+00> : vector<16x64xf32>
    %203 = tpu.matmul %202, %201, %cst_71 {dimension_numbers = #tpu.dot_dimension_numbers<[1], [0], [0], [1], [0, 0, 1, 1], [], []>} : vector<16x64xbf16>, vector<64x64xbf16>, vector<16x64xf32> -> vector<16x64xf32>
    %c8_72 = arith.constant 8 : index
    %c0_73 = arith.constant 0 : index
    %204 = vector.load %arg4[%c8_72, %c0_73] : memref<16x64xf32, #tpu.memory_space<vmem>>, vector<1x64xf32>
    %205 = vector.broadcast %204 : vector<1x64xf32> to vector<16x64xf32>
    %206 = arith.addf %203, %205 : vector<16x64xf32>
    %207 = math.tanh %206 : vector<16x64xf32>
    %c9 = arith.constant 9 : index
    %c0_74 = arith.constant 0 : index
    %c0_75 = arith.constant 0 : index
    %208 = vector.load %arg3[%c9, %c0_74, %c0_75] : memref<10x128x64xbf16, #tpu.memory_space<vmem>>, vector<1x128x64xbf16>
    %209 = vector.shape_cast %208 : vector<1x128x64xbf16> to vector<128x64xbf16>
    %210 = vector.extract_strided_slice %209 {offsets = [0, 0], sizes = [64, 64], strides = [1, 1]} : vector<128x64xbf16> to vector<64x64xbf16>
    %211 = arith.truncf %207 : vector<16x64xf32> to vector<16x64xbf16>
    %cst_76 = arith.constant dense<0.000000e+00> : vector<16x64xf32>
    %212 = tpu.matmul %211, %210, %cst_76 {dimension_numbers = #tpu.dot_dimension_numbers<[1], [0], [0], [1], [0, 0, 1, 1], [], []>} : vector<16x64xbf16>, vector<64x64xbf16>, vector<16x64xf32> -> vector<16x64xf32>
    %c9_77 = arith.constant 9 : index
    %c0_78 = arith.constant 0 : index
    %213 = vector.load %arg4[%c9_77, %c0_78] : memref<16x64xf32, #tpu.memory_space<vmem>>, vector<1x64xf32>
    %214 = vector.broadcast %213 : vector<1x64xf32> to vector<16x64xf32>
    %215 = arith.addf %212, %214 : vector<16x64xf32>
    %216 = vector.extract_strided_slice %215 {offsets = [0, 0], sizes = [16, 2], strides = [1, 1]} : vector<16x64xf32> to vector<16x2xf32>
    %cst_79 = arith.constant dense<0xFF800000> : vector<16xf32>
    %217 = vector.multi_reduction <maximumf>, %216, %cst_79 [1] : vector<16x2xf32> to vector<16xf32>
    %218 = vector.shape_cast %217 : vector<16xf32> to vector<16x1xf32>
    %219 = vector.broadcast %218 : vector<16x1xf32> to vector<16x2xf32>
    %220 = arith.subf %216, %219 : vector<16x2xf32>
    %221 = math.exp %220 : vector<16x2xf32>
    %cst_80 = arith.constant dense<0.000000e+00> : vector<16xf32>
    %222 = vector.multi_reduction <add>, %221, %cst_80 [1] : vector<16x2xf32> to vector<16xf32>
    %223 = vector.shape_cast %222 : vector<16xf32> to vector<16x1xf32>
    %224 = vector.broadcast %223 : vector<16x1xf32> to vector<16x2xf32>
    %225 = arith.divf %221, %224 : vector<16x2xf32>
    %c0_81 = arith.constant 0 : index
    %c0_82 = arith.constant 0 : index
    %c0_83 = arith.constant 0 : index
    %226 = vector.load %arg5[%c0_81, %c0_82, %c0_83] : memref<1x16x2xf32, #tpu.memory_space<vmem>>, vector<1x16x2xf32>
    %227 = vector.shape_cast %226 : vector<1x16x2xf32> to vector<16x2xf32>
    %228 = vector.shape_cast %225 : vector<16x2xf32> to vector<1x16x2xf32>
    tpu.vector_store %arg5[%c0_81, %c0_82, %c0_83], %228 {strides = array<i32>} : memref<1x16x2xf32, #tpu.memory_space<vmem>>, vector<1x16x2xf32>,
    return
  }
  func.func @transform_0(%arg0: i32) -> (i32, i32, i32) {
    %c0_i32 = arith.constant 0 : i32
    %c0_i32_0 = arith.constant 0 : i32
    %c0_i32_1 = arith.constant 0 : i32
    return %arg0, %c0_i32, %c0_i32_0 : i32, i32, i32
  }
  func.func @transform_1(%arg0: i32) -> (i32, i32, i32) {
    %c0_i32 = arith.constant 0 : i32
    %c0_i32_0 = arith.constant 0 : i32
    %c0_i32_1 = arith.constant 0 : i32
    return %arg0, %c0_i32, %c0_i32_0 : i32, i32, i32
  }
  func.func @transform_2(%arg0: i32) -> (i32, i32, i32) {
    %c0_i32 = arith.constant 0 : i32
    %c0_i32_0 = arith.constant 0 : i32
    %c0_i32_1 = arith.constant 0 : i32
    %c0_i32_2 = arith.constant 0 : i32
    return %c0_i32, %c0_i32_0, %c0_i32_1 : i32, i32, i32
  }
  func.func @transform_3(%arg0: i32) -> (i32, i32) {
    %c0_i32 = arith.constant 0 : i32
    %c0_i32_0 = arith.constant 0 : i32
    %c0_i32_1 = arith.constant 0 : i32
    return %c0_i32, %c0_i32_0 : i32, i32
  }
  func.func @transform_4(%arg0: i32) -> (i32, i32, i32) {
    %c0_i32 = arith.constant 0 : i32
    %c0_i32_0 = arith.constant 0 : i32
    %c0_i32_1 = arith.constant 0 : i32
    return %arg0, %c0_i32, %c0_i32_0 : i32, i32, i32
  }
}

</mosaic_0001>

<llo_original>
// kernel: sage_res_forward.1
$region0: #{sage_res_forward.1}
  #allocation0 [shape = 'u32[]', space=smem, size = 0x4, offset = 0x4, fixed_abs, tag = 'smem constant byte address 0x4 - core index']
  #allocation1 [shape = 'u32[144,128]{1,0:T(1,128)}', space=vmem, size = 0x12000, scoped, tag = 'internal scratch']
  %s0 = inlined_call_operand.vmem [shape: f32[4,16,3], index: 0, kind: input, shape index: {}]
  %s1 = inlined_call_operand.vmem [shape: s32[4,2,48], index: 1, kind: input, shape index: {}]
  %s2 = inlined_call_operand.vmem [shape: bf16[10,128,64], index: 2, kind: input, shape index: {}]
  %s3 = inlined_call_operand.vmem [shape: f32[16,64], index: 3, kind: input, shape index: {}]
  %s4 = inlined_call_operand.vmem [shape: f32[4,16,2], index: 4, kind: output, shape index: {}]
  %s5 = sld [smem:[#allocation0]]
  $region49: #{sage_res_forward.1} parent=0
    _
  %s7 = ssub.s32 1, %s5
  %s8 = scalar_select 0, %s7, %s5
  loop: start=0, step=1, limit=6
  $region2: #{sage_res_forward.1} parent=0 // loop_pre_header
    _
  $region3: #{sage_res_forward.1} parent=0 // loop_header
    %s10 = sphi 0, %s14
    %p11 = scmp.ge.s32.totalorder %s10, 6
    %s20 = sphi 0, %s22
    %s23 = sphi 0, %s20
    %s24 = sphi 0, %s23
    %s40 = sphi 0, %s24
    %s46 = sphi 0, %s48
    %s49 = sphi 0, %s46
    %s50 = sphi 0, %s49
    %s66 = sphi 0, %s50
    %s70 = sphi 0, %s70
    %s72 = sphi 0, %s70
    %s73 = sphi 0, %s72
    %s87 = sphi 0, %s73
    %s91 = sphi 0, %s91
    %s93 = sphi 0, %s91
    %s94 = sphi 0, %s93
    %s108 = sphi 0, %s94
    %s114 = sphi 0, %s116
    %s117 = sphi 0, %s114
    %s118 = sphi 0, %s117
    %s134 = sphi 0, %s118
  $region4: #{sage_res_forward.1} parent=0 // loop_header_branch
    %13 = sbr.rel (%p11) target = $region8
  $region5: #{sage_res_forward.1} parent=0 // loop_body
    %s15 = ssub.s32 %s10, 1
    %s16 = ssub.s32 %s10, 2
    %s17 = sadd.s32 %s10, 1
    %s18 = ssub.s32 %s10, %s17
    %p19 = scmp.eq.s32.totalorder %s18, 0
    %s21 = sadd.s32 %s20, 1
    %s22 = scalar_select %p19, %s20, %s21
    %p25 = pneg %p19
    %p26 = scmp.eq.s32.totalorder %s10, 3
    %p27 = por %p25, %p26
    %p28 = scmp.ne.s32.totalorder %s20, %s23
    %p29 = scmp.eq.s32.totalorder %s10, 0
    %p30 = por %p28, %p29
    %p31 = scmp.ne.s32.totalorder %s20, %s23
    %p32 = scmp.eq.s32.totalorder %s15, 3
    %p33 = por %p31, %p32
    %p34 = scmp.ne.s32.totalorder %s23, %s24
    %p35 = scmp.eq.s32.totalorder %s15, 0
    %p36 = por %p34, %p35
    %p37 = scmp.ne.s32.totalorder %s23, %s24
    %p38 = scmp.eq.s32.totalorder %s16, 3
    %p39 = por %p37, %p38
    %p41 = scmp.ne.s32.totalorder %s24, %s40
    %p42 = scmp.eq.s32.totalorder %s16, 0
    %p43 = por %p41, %p42
    %s44 = ssub.s32 %s10, %s17
    %p45 = scmp.eq.s32.totalorder %s44, 0
    %s47 = sadd.s32 %s46, 1
    %s48 = scalar_select %p45, %s46, %s47
    %p51 = pneg %p45
    %p52 = scmp.eq.s32.totalorder %s10, 3
    %p53 = por %p51, %p52
    %p54 = scmp.ne.s32.totalorder %s46, %s49
    %p55 = scmp.eq.s32.totalorder %s10, 0
    %p56 = por %p54, %p55
    %p57 = scmp.ne.s32.totalorder %s46, %s49
    %p58 = scmp.eq.s32.totalorder %s15, 3
    %p59 = por %p57, %p58
    %p60 = scmp.ne.s32.totalorder %s49, %s50
    %p61 = scmp.eq.s32.totalorder %s15, 0
    %p62 = por %p60, %p61
    %p63 = scmp.ne.s32.totalorder %s49, %s50
    %p64 = scmp.eq.s32.totalorder %s16, 3
    %p65 = por %p63, %p64
    %p67 = scmp.ne.s32.totalorder %s50, %s66
    %p68 = scmp.eq.s32.totalorder %s16, 0
    %p69 = por %p67, %p68
    %s71 = sadd.s32 %s70, 1
    %p74 = scmp.eq.s32.totalorder %s10, 3
    %p75 = scmp.ne.s32.totalorder %s70, %s72
    %p76 = scmp.eq.s32.totalorder %s10, 0
    %p77 = por %p75, %p76
    %p78 = scmp.ne.s32.totalorder %s70, %s72
    %p79 = scmp.eq.s32.totalorder %s15, 3
    %p80 = por %p78, %p79
    %p81 = scmp.ne.s32.totalorder %s72, %s73
    %p82 = scmp.eq.s32.totalorder %s15, 0
    %p83 = por %p81, %p82
    %p84 = scmp.ne.s32.totalorder %s72, %s73
    %p85 = scmp.eq.s32.totalorder %s16, 3
    %p86 = por %p84, %p85
    %p88 = scmp.ne.s32.totalorder %s73, %s87
    %p89 = scmp.eq.s32.totalorder %s16, 0
    %p90 = por %p88, %p89
    %s92 = sadd.s32 %s91, 1
    %p95 = scmp.eq.s32.totalorder %s10, 3
    %p96 = scmp.ne.s32.totalorder %s91, %s93
    %p97 = scmp.eq.s32.totalorder %s10, 0
    %p98 = por %p96, %p97
    %p99 = scmp.ne.s32.totalorder %s91, %s93
    %p100 = scmp.eq.s32.totalorder %s15, 3
    %p101 = por %p99, %p100
    %p102 = scmp.ne.s32.totalorder %s93, %s94
    %p103 = scmp.eq.s32.totalorder %s15, 0
    %p104 = por %p102, %p103
    %p105 = scmp.ne.s32.totalorder %s93, %s94
    %p106 = scmp.eq.s32.totalorder %s16, 3
    %p107 = por %p105, %p106
    %p109 = scmp.ne.s32.totalorder %s94, %s108
    %p110 = scmp.eq.s32.totalorder %s16, 0
    %p111 = por %p109, %p110
    %s112 = ssub.s32 %s10, %s17
    %p113 = scmp.eq.s32.totalorder %s112, 0
    %s115 = sadd.s32 %s114, 1
    %s116 = scalar_select %p113, %s114, %s115
    %p119 = pneg %p113
    %p120 = scmp.eq.s32.totalorder %s10, 3
    %p121 = por %p119, %p120
    %p122 = scmp.ne.s32.totalorder %s114, %s117
    %p123 = scmp.eq.s32.totalorder %s10, 0
    %p124 = por %p122, %p123
    %p125 = scmp.ne.s32.totalorder %s114, %s117
    %p126 = scmp.eq.s32.totalorder %s15, 3
    %p127 = por %p125, %p126
    %p128 = scmp.ne.s32.totalorder %s117, %s118
    %p129 = scmp.eq.s32.totalorder %s15, 0
    %p130 = por %p128, %p129
    %p131 = scmp.ne.s32.totalorder %s117, %s118
    %p132 = scmp.eq.s32.totalorder %s16, 3
    %p133 = por %p131, %p132
    %p135 = scmp.ne.s32.totalorder %s118, %s134
    %p136 = scmp.eq.s32.totalorder %s16, 0
    %p137 = por %p135, %p136
    %p138 = scmp.le.s32.totalorder 1, %s10
    %p139 = scmp.lt.s32.totalorder %s10, 5
    %p140 = pnand %p138, %p139
    %p141 = pneg %p140
    // Predicated region
    $region9: #{sage_res_forward.1} parent=5 // pred_check
      _
    $region10: #{sage_res_forward.1} parent=5 // pred_check_branch
      %143 = sbr.rel (%p140) target = $region12
    $region11: #{sage_res_forward.1} parent=5 // pred_region
      %s144 = ssub.s32 %s10, 1
      // Predicated region
      $region13: #{sage_res_forward.1} parent=11 // pred_check
        %p145 = pneg %p83
      $region14: #{sage_res_forward.1} parent=11 // pred_check_branch
        %147 = sbr.rel (%p145) target = $region16
      $region15: #{sage_res_forward.1} parent=11 // pred_region
        _
      $region16: #{sage_res_forward.1} parent=11 // pred_fallthru
        _
      // Predicated region
      $region17: #{sage_res_forward.1} parent=11 // pred_check
        %p148 = pneg %p104
      $region18: #{sage_res_forward.1} parent=11 // pred_check_branch
        %150 = sbr.rel (%p148) target = $region20
      $region19: #{sage_res_forward.1} parent=11 // pred_region
        _
      $region20: #{sage_res_forward.1} parent=11 // pred_fallthru
        _
    $region12: #{sage_res_forward.1} parent=5 // pred_fallthru
      _
    %p151 = scmp.lt.s32.totalorder %s10, 4
    // Predicated region
    $region21: #{sage_res_forward.1} parent=5 // pred_check
      %p152 = pneg %p151
    $region22: #{sage_res_forward.1} parent=5 // pred_check_branch
      %154 = sbr.rel (%p152) target = $region24
    $region23: #{sage_res_forward.1} parent=5 // pred_region
      // Predicated region
      $region25: #{sage_res_forward.1} parent=23 // pred_check
        %p155 = pneg %p30
      $region26: #{sage_res_forward.1} parent=23 // pred_check_branch
        %157 = sbr.rel (%p155) target = $region28
      $region27: #{sage_res_forward.1} parent=23 // pred_region
        %p158 = scmp.lt.s32.totalorder %s10, 3
        %s159 = scalar_select %p158, %s10, 3
        %s160 = smul.addr %s159, 2
        %s161 = smul.addr %s160, 8
        %s162 = scalar_lea.vmem %s0, %s161
      $region28: #{sage_res_forward.1} parent=23 // pred_fallthru
        _
      // Predicated region
      $region29: #{sage_res_forward.1} parent=23 // pred_check
        %p163 = pneg %p56
      $region30: #{sage_res_forward.1} parent=23 // pred_check_branch
        %165 = sbr.rel (%p163) target = $region32
      $region31: #{sage_res_forward.1} parent=23 // pred_region
        %p166 = scmp.lt.s32.totalorder %s10, 3
        %s167 = scalar_select %p166, %s10, 3
        %s168 = smul.addr %s167, 2
        %s169 = scalar_lea.vmem %s1, %s168
      $region32: #{sage_res_forward.1} parent=23 // pred_fallthru
        _
    $region24: #{sage_res_forward.1} parent=5 // pred_fallthru
      _
    %p170 = scmp.le.s32.totalorder 1, %s10
    %p171 = scmp.lt.s32.totalorder %s10, 5
    %p172 = pnand %p170, %p171
    %p173 = pneg %p172
    // Predicated region
    $region33: #{sage_res_forward.1} parent=5 // pred_check
      _
    $region34: #{sage_res_forward.1} parent=5 // pred_check_branch
      %175 = sbr.rel (%p172) target = $region36
    $region35: #{sage_res_forward.1} parent=5 // pred_region
      %s176 = ssub.s32 %s10, 1
      %p177 = scmp.lt.s32.totalorder %s15, 3
      %s178 = scalar_select %p177, %s15, 3
      %s179 = smul.addr %s178, 2
      %s180 = smul.addr %s179, 8
      %s181 = scalar_lea.vmem %s0, %s180
      %p182 = pneg %p36
      %p183 = pneg %p33
      %p184 = scmp.lt.s32.totalorder %s15, 3
      %s185 = scalar_select %p184, %s15, 3
      %s186 = smul.addr %s185, 2
      %s187 = scalar_lea.vmem %s1, %s186
      %p188 = pneg %p62
      %p189 = pneg %p59
      %p190 = pneg %p83
      %p191 = pneg %p80
      %p192 = pneg %p104
      %p193 = pneg %p101
      %p194 = pneg %p130
      %p195 = pneg %p127
      %p196 = scmp.lt.s32.totalorder %s15, 3
      %s197 = scalar_select %p196, %s15, 3
      %s198 = smul.addr %s197, 2
      %s199 = smul.addr %s198, 8
      %s200 = scalar_lea.vmem %s4, %s199
      %p201 = scmp.lt.s32.totalorder %s15, 3
      %s202 = scalar_select %p201, %s15, 3
      %s203 = smul.addr %s202, 2
      %s204 = smul.addr %s203, 8
      %s205 = scalar_lea.vmem %s0, %s204
      %p206 = scmp.lt.s32.totalorder %s15, 3
      %s207 = scalar_select %p206, %s15, 3
      %s208 = smul.addr %s207, 2
      %s209 = scalar_lea.vmem %s1, %s208
      %p210 = scmp.lt.s32.totalorder %s15, 3
      %s211 = scalar_select %p210, %s15, 3
      %s212 = smul.addr %s211, 2
      %s213 = smul.addr %s212, 8
      %s214 = scalar_lea.vmem %s4, %s213
      %v216 = vld [vmem:[%s205] sm:$0xff]
      %v217 = vld [vmem:[%s205 + $0x8] sm:$0xff]
      %vm218 = vcmask 15368
      %v219 = vsel %vm218, %v216, -inf
      %v220 = vsel %vm218, %v217, -inf
      %v221 = vmax.f32 %v219, %v220
      %222 = vmax.xlane.f32.xlu0 %v221
      %v223 = vpop.xlane.xlu0 %222
      %v224 = vrot.slane %v223, 4
      %v225 = vmax.f32 %v223, %v224
      %v226 = vrot.slane %v225, 2
      %v227 = vmax.f32 %v225, %v226
      %v228 = vrot.slane %v227, 1
      %v229 = vmax.f32 %v227, %v228
      %s230 = vtos %v229
      %v231 = vsel %vm218, %v216, inf
      %v232 = vsel %vm218, %v217, inf
      %v233 = vmin.f32 %v231, %v232
      %234 = vmin.xlane.f32.xlu0 %v233
      %v235 = vpop.xlane.xlu0 %234
      %v236 = vrot.slane %v235, 4
      %v237 = vmin.f32 %v235, %v236
      %v238 = vrot.slane %v237, 2
      %v239 = vmin.f32 %v237, %v238
      %v240 = vrot.slane %v239, 1
      %v241 = vmin.f32 %v239, %v240
      %s242 = vtos %v241
      %s243 = ssub.f32 %s230, %s242
      %vm244 = vcmask 7168
      %v245 = vsel %vm244, %v216, -inf
      %v246 = vsel %vm244, %v217, -inf
      %v247 = vmax.f32 %v245, %v246
      %248 = vmax.xlane.f32.xlu0 %v247
      %v249 = vpop.xlane.xlu0 %248
      %v250 = vrot.slane %v249, 4
      %v251 = vmax.f32 %v249, %v250
      %v252 = vrot.slane %v251, 2
      %v253 = vmax.f32 %v251, %v252
      %v254 = vrot.slane %v253, 1
      %v255 = vmax.f32 %v253, %v254
      %s256 = vtos %v255
      %v257 = vsel %vm244, %v216, inf
      %v258 = vsel %vm244, %v217, inf
      %v259 = vmin.f32 %v257, %v258
      %260 = vmin.xlane.f32.xlu0 %v259
      %v261 = vpop.xlane.xlu0 %260
      %v262 = vrot.slane %v261, 4
      %v263 = vmin.f32 %v261, %v262
      %v264 = vrot.slane %v263, 2
      %v265 = vmin.f32 %v263, %v264
      %v266 = vrot.slane %v265, 1
      %v267 = vmin.f32 %v265, %v266
      %s268 = vtos %v267
      %s269 = ssub.f32 %s256, %s268
      %p270 = scmp.gt.f32.partialorder %s243, %s269
      %v271 = vmul.f32 %v216, -4.371139e-08
      %v272 = vmul.f32 %v217, -4.371139e-08
      %275 = vrot.lane.b32.xlu0 %v216, 127
      %v276 = vpop.permute.xlu0 %275
      %277 = vrot.lane.b32.xlu0 %v217, 127
      %v278 = vpop.permute.xlu0 %277
      %v281 = vsub.f32 %v271, %v276
      %v282 = vsub.f32 %v272, %v278
      %285 = vrot.lane.b32.xlu0 %v271, 127
      %v286 = vpop.permute.xlu0 %285
      %287 = vrot.lane.b32.xlu0 %v272, 127
      %v288 = vpop.permute.xlu0 %287
      %v291 = vadd.f32 %v216, %v286
      %v292 = vadd.f32 %v217, %v288
      %s293 = scalar_select %p270, 1, 0
      %v294 = vstv %s293
      %vm295 = vcmp.eq.s32.totalorder %v294, 1
      %v296 = vsel %vm295, %v281, %v216
      %v297 = vsel %vm295, %v282, %v217
      %v298 = vsel %vm295, %v291, %v276
      %v299 = vsel %vm295, %v292, %v278
      %v300 = vsel %vm244, %v296, 0.0
      %v301 = vsel %vm244, %v297, 0.0
      %v302 = vadd.f32 %v300, %v301
      %303 = vadd.xlane.f32.xlu0 %v302
      %v304 = vpop.xlane.xlu0 %303
      %v305 = vrot.slane %v304, 4
      %v306 = vadd.f32 %v304, %v305
      %v307 = vrot.slane %v306, 2
      %v308 = vadd.f32 %v306, %v307
      %v309 = vrot.slane %v308, 1
      %v310 = vadd.f32 %v308, %v309
      %s311 = vtos %v310
      %v312 = vrcp.pop 16.0
      %s313 = vtos %v312
      %s314 = smul.f32 %s311, %s313
      %v315 = vstv %s314
      %v316 = vsub.f32 %v296, %v315
      %v317 = vsub.f32 %v297, %v315
      %v318 = vsel %vm244, %v296, -inf
      %v319 = vsel %vm244, %v297, -inf
      %v320 = vmax.f32 %v318, %v319
      %321 = vmax.xlane.f32.xlu0 %v320
      %v322 = vpop.xlane.xlu0 %321
      %v323 = vrot.slane %v322, 4
      %v324 = vmax.f32 %v322, %v323
      %v325 = vrot.slane %v324, 2
      %v326 = vmax.f32 %v324, %v325
      %v327 = vrot.slane %v326, 1
      %v328 = vmax.f32 %v326, %v327
      %s329 = vtos %v328
      %v330 = vstv %s329
      %v331 = vrcp.pop %v330
      %v332 = vmul.f32 %v316, %v331
      %v333 = vmul.f32 %v317, %v331
      %v334 = vsel %vm244, %v298, 0.0
      %v335 = vsel %vm244, %v299, 0.0
      %v336 = vadd.f32 %v334, %v335
      %337 = vadd.xlane.f32.xlu0 %v336
      %v338 = vpop.xlane.xlu0 %337
      %v339 = vrot.slane %v338, 4
      %v340 = vadd.f32 %v338, %v339
      %v341 = vrot.slane %v340, 2
      %v342 = vadd.f32 %v340, %v341
      %v343 = vrot.slane %v342, 1
      %v344 = vadd.f32 %v342, %v343
      %s345 = vtos %v344
      %v346 = vrcp.pop 16.0
      %s347 = vtos %v346
      %s348 = smul.f32 %s345, %s347
      %v349 = vstv %s348
      %v350 = vsub.f32 %v298, %v349
      %v351 = vsub.f32 %v299, %v349
      %v352 = vsel %vm244, %v298, -inf
      %v353 = vsel %vm244, %v299, -inf
      %v354 = vmax.f32 %v352, %v353
      %355 = vmax.xlane.f32.xlu0 %v354
      %v356 = vpop.xlane.xlu0 %355
      %v357 = vrot.slane %v356, 4
      %v358 = vmax.f32 %v356, %v357
      %v359 = vrot.slane %v358, 2
      %v360 = vmax.f32 %v358, %v359
      %v361 = vrot.slane %v360, 1
      %v362 = vmax.f32 %v360, %v361
      %s363 = vtos %v362
      %v364 = vstv %s363
      %v365 = vrcp.pop %v364
      %v366 = vmul.f32 %v350, %v365
      %v367 = vmul.f32 %v351, %v365
      %vm368 = vcmask 23568
      %v369 = vsel %vm368, %v216, -inf
      %v370 = vsel %vm368, %v217, -inf
      %v371 = vmax.f32 %v369, %v370
      %372 = vmax.xlane.f32.xlu0 %v371
      %v373 = vpop.xlane.xlu0 %372
      %v374 = vrot.slane %v373, 4
      %v375 = vmax.f32 %v373, %v374
      %v376 = vrot.slane %v375, 2
      %v377 = vmax.f32 %v375, %v376
      %v378 = vrot.slane %v377, 1
      %v379 = vmax.f32 %v377, %v378
      %s380 = vtos %v379
      %v381 = vstv %s380
      %v382 = vrcp.pop %v381
      %v383 = vmul.f32 %v216, %v382
      %v384 = vmul.f32 %v217, %v382
      %v385 = vlaneseq
      %v386 = vand.u32 %v385, 127
      %vm387 = vcmp.eq.s32.totalorder %v386, 0
      %vm388 = vcmp.eq.s32.totalorder %v386, 1
      %vm389 = vcmp.eq.s32.totalorder %v386, 2
      %391 = vset.pattern.permute.xlu0 2
      %392 = vperm.xlu0 %391, %v383
      %v393 = vpop.permute.xlu0 %392
      %396 = vset.pattern.permute.xlu0 2
      %397 = vperm.xlu0 %396, %v384
      %v398 = vpop.permute.xlu0 %397
      %v400 = vsel %vm389, %v393, 0.0
      %v401 = vsel %vm389, %v398, 0.0
      %403 = vset.pattern.permute.xlu0 0
      %404 = vperm.xlu0 %403, %v366
      %v405 = vpop.permute.xlu0 %404
      %408 = vset.pattern.permute.xlu0 0
      %409 = vperm.xlu0 %408, %v367
      %v410 = vpop.permute.xlu0 %409
      %v412 = vsel %vm388, %v405, %v400
      %v413 = vsel %vm388, %v410, %v401
      %415 = vset.pattern.permute.xlu0 0
      %416 = vperm.xlu0 %415, %v332
      %v417 = vpop.permute.xlu0 %416
      %420 = vset.pattern.permute.xlu0 0
      %421 = vperm.xlu0 %420, %v333
      %v422 = vpop.permute.xlu0 %421
      %v424 = vsel %vm387, %v417, %v412
      %v425 = vsel %vm387, %v422, %v413
      %v426 = vld [vmem:[%s209] sm:$0x3]
      %v427 = vlaneseq
      %v428 = vshrl.u32 %v427, 7
      %v429 = vadd.s32 %v428, 8
      %v430 = vlaneseq
      %v431 = vshrl.u32 %v430, 7
      %v432 = vsub.s32 0, %v431
      %v433 = vrot.slane %v426, %v432
      %v434 = vlaneseq
      %v435 = vshrl.u32 %v434, 7
      %v436 = vsub.s32 1, %v435
      %v437 = vrot.slane %v426, %v436
      %vm438 = vcmp.eq.s32.totalorder %v433, %v428
      %vm439 = vcmp.eq.s32.totalorder %v433, %v429
      %v440 = vsel %vm438, 1, 0
      %v441 = vsel %vm439, 1, 0
      %v442 = vcvt.s32.f32 %v440
      %v443 = vcvt.s32.f32 %v441
      %vm444 = vcmp.eq.s32.totalorder %v437, %v428
      %vm445 = vcmp.eq.s32.totalorder %v437, %v429
      %v446 = vsel %vm444, 1, 0
      %v447 = vsel %vm445, 1, 0
      %v448 = vcvt.s32.f32 %v446
      %v449 = vcvt.s32.f32 %v447
      %vm450 = vcmask 392192
      %v452 = vsel %vm450, %v448, 0
      %v455 = vsel %vm450, %v449, 0
      %v458 = vsel %vm450, %v442, 0
      %v461 = vsel %vm450, %v443, 0
      %463 = vmatprep.subr.mxu0 0.0
      %464 = vmatpush1.xpose.msra.mxu0 %v458
      %465 = vmatprep.subr.mxu0 0.0
      %466 = vmatpush1.xpose.msra.mxu0 %v461
      %467 = vmatprep.subr.mxu0 0.0
      %468 = vmatpush1.xpose.msra.mxu0 0.0
      %469 = vmatprep.subr.mxu0 0.0
      %470 = vmatpush1.xpose.msra.mxu0 0.0
      %471 = vmatprep.subr.mxu0 0.0
      %472 = vmatpush1.xpose.msra.mxu0 0.0
      %473 = vmatprep.subr.mxu0 0.0
      %474 = vmatpush1.xpose.msra.mxu0 0.0
      %475 = vmatprep.subr.mxu0 0.0
      %476 = vmatpush1.xpose.msra.mxu0 0.0
      %477 = vmatprep.subr.mxu0 0.0
      %478 = vmatpush1.xpose.msra.mxu0 0.0
      %479 = vmatprep.subr.mxu0 0.0
      %480 = vmatpush1.xpose.msra.mxu0 0.0
      %481 = vmatprep.subr.mxu0 0.0
      %482 = vmatpush1.xpose.msra.mxu0 0.0
      %483 = vmatprep.subr.mxu0 0.0
      %484 = vmatpush1.xpose.msra.mxu0 0.0
      %485 = vmatprep.subr.mxu0 0.0
      %486 = vmatpush1.xpose.msra.mxu0 0.0
      %487 = vmatprep.subr.mxu0 0.0
      %488 = vmatpush1.xpose.msra.mxu0 0.0
      %489 = vmatprep.subr.mxu0 0.0
      %490 = vmatpush1.xpose.msra.mxu0 0.0
      %491 = vmatprep.subr.mxu0 0.0
      %492 = vmatpush1.xpose.msra.mxu0 0.0
      %493 = vmatprep.subr.mxu0 0.0
      %494 = vmatpush1.xpose.msra.mxu0 0.0
      %495 = vmatprep.subr.mxu0 0.0
      %496 = vmatpush1.xpose.msra.mxu0 0.0
      %497 = vmatprep.subr.mxu0 0.0
      %498 = vmatpush1.xpose.msra.mxu0 0.0
      %499 = vmatprep.subr.mxu0 0.0
      %500 = vmatpush1.xpose.msra.mxu0 0.0
      %501 = vmatprep.subr.mxu0 0.0
      %502 = vmatpush1.xpose.msra.mxu0 0.0
      %503 = vmatprep.subr.mxu0 0.0
      %504 = vmatpush1.xpose.msra.mxu0 0.0
      %505 = vmatprep.subr.mxu0 0.0
      %506 = vmatpush1.xpose.msra.mxu0 0.0
      %507 = vmatprep.subr.mxu0 0.0
      %508 = vmatpush1.xpose.msra.mxu0 0.0
      %509 = vmatprep.subr.mxu0 0.0
      %510 = vmatpush1.xpose.msra.mxu0 0.0
      %511 = vmatprep.subr.mxu0 0.0
      %512 = vmatpush1.xpose.msra.mxu0 0.0
      %513 = vmatprep.subr.mxu0 0.0
      %514 = vmatpush1.xpose.msra.mxu0 0.0
      %515 = vmatprep.subr.mxu0 0.0
      %516 = vmatpush1.xpose.msra.mxu0 0.0
      %517 = vmatprep.subr.mxu0 0.0
      %518 = vmatpush1.xpose.msra.mxu0 0.0
      %519 = vmatprep.subr.mxu0 0.0
      %520 = vmatpush1.xpose.msra.mxu0 0.0
      %521 = vmatprep.subr.mxu0 0.0
      %522 = vmatpush1.xpose.msra.mxu0 0.0
      %523 = vmatprep.subr.mxu0 0.0
      %524 = vmatpush1.xpose.msra.mxu0 0.0
      %525 = vmatprep.subr.mxu0 0.0
      %526 = vmatpush1.xpose.msra.mxu0 0.0
      %527 = vmatprep.mubr.f32.mxu0 0.0
      %528 = vmatmul.mubr.f32.gmra.mrb[0].mxu0 %v452
      %v529 = vpop.f32.mrb[0].mxu0
      %v530 = vadd.f32 0.0, %v529
      %v531 = vpop.f32.mrb[0].mxu0
      %532 = vmatprep.mubr.f32.mxu0 0.0
      %533 = vmatmul.mubr.f32.gmra.mrb[0].mxu0 %v455
      %v534 = vpop.f32.mrb[0].mxu0
      %v535 = vadd.f32 0.0, %v534
      %v536 = vpop.f32.mrb[0].mxu0
      %537 = vdwg.mxu0
      %vm538 = vcmask 130048
      %v539 = vsel %vm538, %v530, 0.0
      %540 = vadd.xlane.f32.xlu0 %v539
      %v541 = vpop.xlane.xlu0 %540
      %v542 = vsel %vm538, %v535, 0.0
      %543 = vadd.xlane.f32.xlu0 %v542
      %v544 = vpop.xlane.xlu0 %543
      %v545 = vmax.f32 %v541, 1.0
      %v546 = vmax.f32 %v544, 1.0
      %v547 = vrcp.pop %v545
      %v548 = vmul.f32 %v530, %v547
      %v549 = vrcp.pop %v546
      %v550 = vmul.f32 %v535, %v549
      %v551 = vpack.c.bf16 %v550, %v548
      %v552 = vpack.c.bf16 %v425, %v424
      %v554 = vsel %vm538, %v551, 0
      %556 = vmatprep.subr.bf16.mxu0 0
      %557 = vmatpush1.bf16.msra.mxu0 %v552
      %558 = vmatprep.subr.bf16.mxu0 0
      %559 = vmatpush1.bf16.msra.mxu0 0
      %560 = vmatprep.subr.bf16.mxu0 0
      %561 = vmatpush1.bf16.msra.mxu0 0
      %562 = vmatprep.subr.bf16.mxu0 0
      %563 = vmatpush1.bf16.msra.mxu0 0
      %564 = vmatprep.subr.bf16.mxu0 0
      %565 = vmatpush1.bf16.msra.mxu0 0
      %566 = vmatprep.subr.bf16.mxu0 0
      %567 = vmatpush1.bf16.msra.mxu0 0
      %568 = vmatprep.subr.bf16.mxu0 0
      %569 = vmatpush1.bf16.msra.mxu0 0
      %570 = vmatprep.subr.bf16.mxu0 0
      %571 = vmatpush1.bf16.msra.mxu0 0
      %572 = vmatprep.subr.bf16.mxu0 0
      %573 = vmatpush1.bf16.msra.mxu0 0
      %574 = vmatprep.subr.bf16.mxu0 0
      %575 = vmatpush1.bf16.msra.mxu0 0
      %576 = vmatprep.subr.bf16.mxu0 0
      %577 = vmatpush1.bf16.msra.mxu0 0
      %578 = vmatprep.subr.bf16.mxu0 0
      %579 = vmatpush1.bf16.msra.mxu0 0
      %580 = vmatprep.subr.bf16.mxu0 0
      %581 = vmatpush1.bf16.msra.mxu0 0
      %582 = vmatprep.subr.bf16.mxu0 0
      %583 = vmatpush1.bf16.msra.mxu0 0
      %584 = vmatprep.subr.bf16.mxu0 0
      %585 = vmatpush1.bf16.msra.mxu0 0
      %586 = vmatprep.subr.bf16.mxu0 0
      %587 = vmatpush1.bf16.msra.mxu0 0
      %588 = vmatprep.mubr.bf16.mxu0 0
      %589 = vmatmul.mubr.bf16.gmra.mrb[0].mxu0 %v554
      %v590 = vpop.f32.mrb[0].mxu0
      %v591 = vadd.f32 0.0, %v590
      %v592 = vpop.f32.mrb[0].mxu0
      %v593 = vpop.f32.mrb[0].mxu0
      %v594 = vadd.f32 0.0, %v593
      %v595 = vpop.f32.mrb[0].mxu0
      %596 = vdwg.mxu0
      %599 = vrot.lane.b32.xlu0 %v424, 64
      %v600 = vpop.permute.xlu0 %599
      %601 = vrot.lane.b32.xlu0 %v425, 64
      %v602 = vpop.permute.xlu0 %601
      %vm605 = vcmask 523264
      %v606 = vsel %vm605, %v591, %v600
      %v607 = vsel %vm605, %v594, %v602
      %v608 = vpack.c.bf16 %v607, %v606
      %v609 = vld [vmem:[%s2] sm:$0xf]
      %v610 = vld [vmem:[%s2 + $0x4] sm:$0xf]
      %v611 = vld [vmem:[%s2 + $0x8] sm:$0xf]
      %v612 = vld [vmem:[%s2 + $0xc] sm:$0xf]
      %v613 = vld [vmem:[%s2 + $0x10] sm:$0xf]
      %v614 = vld [vmem:[%s2 + $0x14] sm:$0xf]
      %v615 = vld [vmem:[%s2 + $0x18] sm:$0xf]
      %v616 = vld [vmem:[%s2 + $0x1c] sm:$0xf]
      %v617 = vld [vmem:[%s2 + $0x20] sm:$0xf]
      %v618 = vld [vmem:[%s2 + $0x24] sm:$0xf]
      %v619 = vld [vmem:[%s2 + $0x28] sm:$0xf]
      %v620 = vld [vmem:[%s2 + $0x2c] sm:$0xf]
      %v621 = vld [vmem:[%s2 + $0x30] sm:$0xf]
      %v622 = vld [vmem:[%s2 + $0x34] sm:$0xf]
      %v623 = vld [vmem:[%s2 + $0x38] sm:$0xf]
      %v624 = vld [vmem:[%s2 + $0x3c] sm:$0xf]
      %v625 = vld [vmem:[%s3] sm:$0x1]
      %v626 = vlaneseq
      %v627 = vshrl.u32 %v626, 7
      %v628 = vsub.s32 0, %v627
      %v629 = vrot.slane %v625, %v628
      %v646 = vunpack.c.l.b16 %v609
      %v647 = vunpack.c.l.b16 %v610
      %v648 = vunpack.c.l.b16 %v611
      %v649 = vunpack.c.l.b16 %v612
      %v650 = vunpack.c.l.b16 %v613
      %v651 = vunpack.c.l.b16 %v614
      %v652 = vunpack.c.l.b16 %v615
      %v653 = vunpack.c.l.b16 %v616
      %v654 = vunpack.c.l.b16 %v617
      %v655 = vunpack.c.l.b16 %v618
      %v656 = vunpack.c.l.b16 %v619
      %v657 = vunpack.c.l.b16 %v620
      %v658 = vunpack.c.l.b16 %v621
      %v659 = vunpack.c.l.b16 %v622
      %v660 = vunpack.c.l.b16 %v623
      %v661 = vunpack.c.l.b16 %v624
      %v662 = vpack.c.b16 %v647, %v646
      %v663 = vpack.c.b16 %v649, %v648
      %v664 = vpack.c.b16 %v651, %v650
      %v665 = vpack.c.b16 %v653, %v652
      %v666 = vpack.c.b16 %v655, %v654
      %v667 = vpack.c.b16 %v657, %v656
      %v668 = vpack.c.b16 %v659, %v658
      %v669 = vpack.c.b16 %v661, %v660
      %678 = vmatprep.subr.bf16.mxu0 0
      %679 = vmatpush1.bf16.msra.mxu0 %v662
      %680 = vmatprep.subr.bf16.mxu0 0
      %681 = vmatpush1.bf16.msra.mxu0 %v663
      %682 = vmatprep.subr.bf16.mxu0 0
      %683 = vmatpush1.bf16.msra.mxu0 %v664
      %684 = vmatprep.subr.bf16.mxu0 0
      %685 = vmatpush1.bf16.msra.mxu0 %v665
      %686 = vmatprep.subr.bf16.mxu0 0
      %687 = vmatpush1.bf16.msra.mxu0 %v666
      %688 = vmatprep.subr.bf16.mxu0 0
      %689 = vmatpush1.bf16.msra.mxu0 %v667
      %690 = vmatprep.subr.bf16.mxu0 0
      %691 = vmatpush1.bf16.msra.mxu0 %v668
      %692 = vmatprep.subr.bf16.mxu0 0
      %693 = vmatpush1.bf16.msra.mxu0 %v669
      %694 = vmatprep.subr.bf16.mxu0 0
      %695 = vmatpush1.bf16.msra.mxu0 0
      %696 = vmatprep.subr.bf16.mxu0 0
      %697 = vmatpush1.bf16.msra.mxu0 0
      %698 = vmatprep.subr.bf16.mxu0 0
      %699 = vmatpush1.bf16.msra.mxu0 0
      %700 = vmatprep.subr.bf16.mxu0 0
      %701 = vmatpush1.bf16.msra.mxu0 0
      %702 = vmatprep.subr.bf16.mxu0 0
      %703 = vmatpush1.bf16.msra.mxu0 0
      %704 = vmatprep.subr.bf16.mxu0 0
      %705 = vmatpush1.bf16.msra.mxu0 0
      %706 = vmatprep.subr.bf16.mxu0 0
      %707 = vmatpush1.bf16.msra.mxu0 0
      %708 = vmatprep.subr.bf16.mxu0 0
      %709 = vmatpush1.bf16.msra.mxu0 0
      %710 = vmatprep.mubr.bf16.mxu0 0
      %711 = vmatmul.mubr.bf16.gmra.mrb[0].mxu0 %v608
      %v712 = vpop.f32.mrb[0].mxu0
      %v713 = vadd.f32 %v629, %v712
      %v714 = vpop.f32.mrb[0].mxu0
      %v715 = vpop.f32.mrb[0].mxu0
      %v716 = vadd.f32 %v629, %v715
      %v717 = vpop.f32.mrb[0].mxu0
      %718 = vdwg.mxu0
      %v719 = vtanh.pop %v713
      %v720 = vtanh.pop %v716
      %v721 = vpack.c.bf16 %v720, %v719
      %722 = vmatprep.subr.bf16.mxu0 0
      %723 = vmatpush1.bf16.msra.mxu0 %v721
      %724 = vmatprep.subr.bf16.mxu0 0
      %725 = vmatpush1.bf16.msra.mxu0 0
      %726 = vmatprep.subr.bf16.mxu0 0
      %727 = vmatpush1.bf16.msra.mxu0 0
      %728 = vmatprep.subr.bf16.mxu0 0
      %729 = vmatpush1.bf16.msra.mxu0 0
      %730 = vmatprep.subr.bf16.mxu0 0
      %731 = vmatpush1.bf16.msra.mxu0 0
      %732 = vmatprep.subr.bf16.mxu0 0
      %733 = vmatpush1.bf16.msra.mxu0 0
      %734 = vmatprep.subr.bf16.mxu0 0
      %735 = vmatpush1.bf16.msra.mxu0 0
      %736 = vmatprep.subr.bf16.mxu0 0
      %737 = vmatpush1.bf16.msra.mxu0 0
      %738 = vmatprep.subr.bf16.mxu0 0
      %739 = vmatpush1.bf16.msra.mxu0 0
      %740 = vmatprep.subr.bf16.mxu0 0
      %741 = vmatpush1.bf16.msra.mxu0 0
      %742 = vmatprep.subr.bf16.mxu0 0
      %743 = vmatpush1.bf16.msra.mxu0 0
      %744 = vmatprep.subr.bf16.mxu0 0
      %745 = vmatpush1.bf16.msra.mxu0 0
      %746 = vmatprep.subr.bf16.mxu0 0
      %747 = vmatpush1.bf16.msra.mxu0 0
      %748 = vmatprep.subr.bf16.mxu0 0
      %749 = vmatpush1.bf16.msra.mxu0 0
      %750 = vmatprep.subr.bf16.mxu0 0
      %751 = vmatpush1.bf16.msra.mxu0 0
      %752 = vmatprep.subr.bf16.mxu0 0
      %753 = vmatpush1.bf16.msra.mxu0 0
      %754 = vmatprep.mubr.bf16.mxu0 0
      %755 = vmatmul.mubr.bf16.gmra.mrb[0].mxu0 %v554
      %v756 = vpop.f32.mrb[0].mxu0
      %v757 = vadd.f32 0.0, %v756
      %v758 = vpop.f32.mrb[0].mxu0
      %v759 = vpop.f32.mrb[0].mxu0
      %v760 = vadd.f32 0.0, %v759
      %v761 = vpop.f32.mrb[0].mxu0
      %762 = vdwg.mxu0
      %765 = vrot.lane.b32.xlu0 %v719, 64
      %v766 = vpop.permute.xlu0 %765
      %767 = vrot.lane.b32.xlu0 %v720, 64
      %v768 = vpop.permute.xlu0 %767
      %v771 = vsel %vm605, %v757, %v766
      %v772 = vsel %vm605, %v760, %v768
      %v773 = vpack.c.bf16 %v772, %v771
      %s774 = scalar_lea.vmem %s2, 64
      %v775 = vld [vmem:[%s774] sm:$0xf]
      %v776 = vld [vmem:[%s774 + $0x4] sm:$0xf]
      %v777 = vld [vmem:[%s774 + $0x8] sm:$0xf]
      %v778 = vld [vmem:[%s774 + $0xc] sm:$0xf]
      %v779 = vld [vmem:[%s774 + $0x10] sm:$0xf]
      %v780 = vld [vmem:[%s774 + $0x14] sm:$0xf]
      %v781 = vld [vmem:[%s774 + $0x18] sm:$0xf]
      %v782 = vld [vmem:[%s774 + $0x1c] sm:$0xf]
      %v783 = vld [vmem:[%s774 + $0x20] sm:$0xf]
      %v784 = vld [vmem:[%s774 + $0x24] sm:$0xf]
      %v785 = vld [vmem:[%s774 + $0x28] sm:$0xf]
      %v786 = vld [vmem:[%s774 + $0x2c] sm:$0xf]
      %v787 = vld [vmem:[%s774 + $0x30] sm:$0xf]
      %v788 = vld [vmem:[%s774 + $0x34] sm:$0xf]
      %v789 = vld [vmem:[%s774 + $0x38] sm:$0xf]
      %v790 = vld [vmem:[%s774 + $0x3c] sm:$0xf]
      %v791 = vld [vmem:[%s3 + $0x1] sm:$0x1]
      %v792 = vlaneseq
      %v793 = vshrl.u32 %v792, 7
      %v794 = vsub.s32 0, %v793
      %v795 = vrot.slane %v791, %v794
      %v812 = vunpack.c.l.b16 %v775
      %v813 = vunpack.c.l.b16 %v776
      %v814 = vunpack.c.l.b16 %v777
      %v815 = vunpack.c.l.b16 %v778
      %v816 = vunpack.c.l.b16 %v779
      %v817 = vunpack.c.l.b16 %v780
      %v818 = vunpack.c.l.b16 %v781
      %v819 = vunpack.c.l.b16 %v782
      %v820 = vunpack.c.l.b16 %v783
      %v821 = vunpack.c.l.b16 %v784
      %v822 = vunpack.c.l.b16 %v785
      %v823 = vunpack.c.l.b16 %v786
      %v824 = vunpack.c.l.b16 %v787
      %v825 = vunpack.c.l.b16 %v788
      %v826 = vunpack.c.l.b16 %v789
      %v827 = vunpack.c.l.b16 %v790
      %v828 = vpack.c.b16 %v813, %v812
      %v829 = vpack.c.b16 %v815, %v814
      %v830 = vpack.c.b16 %v817, %v816
      %v831 = vpack.c.b16 %v819, %v818
      %v832 = vpack.c.b16 %v821, %v820
      %v833 = vpack.c.b16 %v823, %v822
      %v834 = vpack.c.b16 %v825, %v824
      %v835 = vpack.c.b16 %v827, %v826
      %844 = vmatprep.subr.bf16.mxu0 0
      %845 = vmatpush1.bf16.msra.mxu0 %v828
      %846 = vmatprep.subr.bf16.mxu0 0
      %847 = vmatpush1.bf16.msra.mxu0 %v829
      %848 = vmatprep.subr.bf16.mxu0 0
      %849 = vmatpush1.bf16.msra.mxu0 %v830
      %850 = vmatprep.subr.bf16.mxu0 0
      %851 = vmatpush1.bf16.msra.mxu0 %v831
      %852 = vmatprep.subr.bf16.mxu0 0
      %853 = vmatpush1.bf16.msra.mxu0 %v832
      %854 = vmatprep.subr.bf16.mxu0 0
      %855 = vmatpush1.bf16.msra.mxu0 %v833
      %856 = vmatprep.subr.bf16.mxu0 0
      %857 = vmatpush1.bf16.msra.mxu0 %v834
      %858 = vmatprep.subr.bf16.mxu0 0
      %859 = vmatpush1.bf16.msra.mxu0 %v835
      %860 = vmatprep.subr.bf16.mxu0 0
      %861 = vmatpush1.bf16.msra.mxu0 0
      %862 = vmatprep.subr.bf16.mxu0 0
      %863 = vmatpush1.bf16.msra.mxu0 0
      %864 = vmatprep.subr.bf16.mxu0 0
      %865 = vmatpush1.bf16.msra.mxu0 0
      %866 = vmatprep.subr.bf16.mxu0 0
      %867 = vmatpush1.bf16.msra.mxu0 0
      %868 = vmatprep.subr.bf16.mxu0 0
      %869 = vmatpush1.bf16.msra.mxu0 0
      %870 = vmatprep.subr.bf16.mxu0 0
      %871 = vmatpush1.bf16.msra.mxu0 0
      %872 = vmatprep.subr.bf16.mxu0 0
      %873 = vmatpush1.bf16.msra.mxu0 0
      %874 = vmatprep.subr.bf16.mxu0 0
      %875 = vmatpush1.bf16.msra.mxu0 0
      %876 = vmatprep.mubr.bf16.mxu0 0
      %877 = vmatmul.mubr.bf16.gmra.mrb[0].mxu0 %v773
      %v878 = vpop.f32.mrb[0].mxu0
      %v879 = vadd.f32 %v795, %v878
      %v880 = vpop.f32.mrb[0].mxu0
      %v881 = vpop.f32.mrb[0].mxu0
      %v882 = vadd.f32 %v795, %v881
      %v883 = vpop.f32.mrb[0].mxu0
      %884 = vdwg.mxu0
      %v885 = vtanh.pop %v879
      %v886 = vtanh.pop %v882
      %v887 = vpack.c.bf16 %v886, %v885
      %888 = vmatprep.subr.bf16.mxu0 0
      %889 = vmatpush1.bf16.msra.mxu0 %v887
      %890 = vmatprep.subr.bf16.mxu0 0
      %891 = vmatpush1.bf16.msra.mxu0 0
      %892 = vmatprep.subr.bf16.mxu0 0
      %893 = vmatpush1.bf16.msra.mxu0 0
      %894 = vmatprep.subr.bf16.mxu0 0
      %895 = vmatpush1.bf16.msra.mxu0 0
      %896 = vmatprep.subr.bf16.mxu0 0
      %897 = vmatpush1.bf16.msra.mxu0 0
      %898 = vmatprep.subr.bf16.mxu0 0
      %899 = vmatpush1.bf16.msra.mxu0 0
      %900 = vmatprep.subr.bf16.mxu0 0
      %901 = vmatpush1.bf16.msra.mxu0 0
      %902 = vmatprep.subr.bf16.mxu0 0
      %903 = vmatpush1.bf16.msra.mxu0 0
      %904 = vmatprep.subr.bf16.mxu0 0
      %905 = vmatpush1.bf16.msra.mxu0 0
      %906 = vmatprep.subr.bf16.mxu0 0
      %907 = vmatpush1.bf16.msra.mxu0 0
      %908 = vmatprep.subr.bf16.mxu0 0
      %909 = vmatpush1.bf16.msra.mxu0 0
      %910 = vmatprep.subr.bf16.mxu0 0
      %911 = vmatpush1.bf16.msra.mxu0 0
      %912 = vmatprep.subr.bf16.mxu0 0
      %913 = vmatpush1.bf16.msra.mxu0 0
      %914 = vmatprep.subr.bf16.mxu0 0
      %915 = vmatpush1.bf16.msra.mxu0 0
      %916 = vmatprep.subr.bf16.mxu0 0
      %917 = vmatpush1.bf16.msra.mxu0 0
      %918 = vmatprep.subr.bf16.mxu0 0
      %919 = vmatpush1.bf16.msra.mxu0 0
      %920 = vmatprep.mubr.bf16.mxu0 0
      %921 = vmatmul.mubr.bf16.gmra.mrb[0].mxu0 %v554
      %v922 = vpop.f32.mrb[0].mxu0
      %v923 = vadd.f32 0.0, %v922
      %v924 = vpop.f32.mrb[0].mxu0
      %v925 = vpop.f32.mrb[0].mxu0
      %v926 = vadd.f32 0.0, %v925
      %v927 = vpop.f32.mrb[0].mxu0
      %928 = vdwg.mxu0
      %931 = vrot.lane.b32.xlu0 %v885, 64
      %v932 = vpop.permute.xlu0 %931
      %933 = vrot.lane.b32.xlu0 %v886, 64
      %v934 = vpop.permute.xlu0 %933
      %v937 = vsel %vm605, %v923, %v932
      %v938 = vsel %vm605, %v926, %v934
      %v939 = vpack.c.bf16 %v938, %v937
      %s940 = scalar_lea.vmem %s2, 128
      %v941 = vld [vmem:[%s940] sm:$0xf]
      %v942 = vld [vmem:[%s940 + $0x4] sm:$0xf]
      %v943 = vld [vmem:[%s940 + $0x8] sm:$0xf]
      %v944 = vld [vmem:[%s940 + $0xc] sm:$0xf]
      %v945 = vld [vmem:[%s940 + $0x10] sm:$0xf]
      %v946 = vld [vmem:[%s940 + $0x14] sm:$0xf]
      %v947 = vld [vmem:[%s940 + $0x18] sm:$0xf]
      %v948 = vld [vmem:[%s940 + $0x1c] sm:$0xf]
      %v949 = vld [vmem:[%s940 + $0x20] sm:$0xf]
      %v950 = vld [vmem:[%s940 + $0x24] sm:$0xf]
      %v951 = vld [vmem:[%s940 + $0x28] sm:$0xf]
      %v952 = vld [vmem:[%s940 + $0x2c] sm:$0xf]
      %v953 = vld [vmem:[%s940 + $0x30] sm:$0xf]
      %v954 = vld [vmem:[%s940 + $0x34] sm:$0xf]
      %v955 = vld [vmem:[%s940 + $0x38] sm:$0xf]
      %v956 = vld [vmem:[%s940 + $0x3c] sm:$0xf]
      %v957 = vld [vmem:[%s3 + $0x2] sm:$0x1]
      %v958 = vlaneseq
      %v959 = vshrl.u32 %v958, 7
      %v960 = vsub.s32 0, %v959
      %v961 = vrot.slane %v957, %v960
      %v978 = vunpack.c.l.b16 %v941
      %v979 = vunpack.c.l.b16 %v942
      %v980 = vunpack.c.l.b16 %v943
      %v981 = vunpack.c.l.b16 %v944
      %v982 = vunpack.c.l.b16 %v945
      %v983 = vunpack.c.l.b16 %v946
      %v984 = vunpack.c.l.b16 %v947
      %v985 = vunpack.c.l.b16 %v948
      %v986 = vunpack.c.l.b16 %v949
      %v987 = vunpack.c.l.b16 %v950
      %v988 = vunpack.c.l.b16 %v951
      %v989 = vunpack.c.l.b16 %v952
      %v990 = vunpack.c.l.b16 %v953
      %v991 = vunpack.c.l.b16 %v954
      %v992 = vunpack.c.l.b16 %v955
      %v993 = vunpack.c.l.b16 %v956
      %v994 = vpack.c.b16 %v979, %v978
      %v995 = vpack.c.b16 %v981, %v980
      %v996 = vpack.c.b16 %v983, %v982
      %v997 = vpack.c.b16 %v985, %v984
      %v998 = vpack.c.b16 %v987, %v986
      %v999 = vpack.c.b16 %v989, %v988
      %v1000 = vpack.c.b16 %v991, %v990
      %v1001 = vpack.c.b16 %v993, %v992
      %1010 = vmatprep.subr.bf16.mxu0 0
      %1011 = vmatpush1.bf16.msra.mxu0 %v994
      %1012 = vmatprep.subr.bf16.mxu0 0
      %1013 = vmatpush1.bf16.msra.mxu0 %v995
      %1014 = vmatprep.subr.bf16.mxu0 0
      %1015 = vmatpush1.bf16.msra.mxu0 %v996
      %1016 = vmatprep.subr.bf16.mxu0 0
      %1017 = vmatpush1.bf16.msra.mxu0 %v997
      %1018 = vmatprep.subr.bf16.mxu0 0
      %1019 = vmatpush1.bf16.msra.mxu0 %v998
      %1020 = vmatprep.subr.bf16.mxu0 0
      %1021 = vmatpush1.bf16.msra.mxu0 %v999
      %1022 = vmatprep.subr.bf16.mxu0 0
      %1023 = vmatpush1.bf16.msra.mxu0 %v1000
      %1024 = vmatprep.subr.bf16.mxu0 0
      %1025 = vmatpush1.bf16.msra.mxu0 %v1001
      %1026 = vmatprep.subr.bf16.mxu0 0
      %1027 = vmatpush1.bf16.msra.mxu0 0
      %1028 = vmatprep.subr.bf16.mxu0 0
      %1029 = vmatpush1.bf16.msra.mxu0 0
      %1030 = vmatprep.subr.bf16.mxu0 0
      %1031 = vmatpush1.bf16.msra.mxu0 0
      %1032 = vmatprep.subr.bf16.mxu0 0
      %1033 = vmatpush1.bf16.msra.mxu0 0
      %1034 = vmatprep.subr.bf16.mxu0 0
      %1035 = vmatpush1.bf16.msra.mxu0 0
      %1036 = vmatprep.subr.bf16.mxu0 0
      %1037 = vmatpush1.bf16.msra.mxu0 0
      %1038 = vmatprep.subr.bf16.mxu0 0
      %1039 = vmatpush1.bf16.msra.mxu0 0
      %1040 = vmatprep.subr.bf16.mxu0 0
      %1041 = vmatpush1.bf16.msra.mxu0 0
      %1042 = vmatprep.mubr.bf16.mxu0 0
      %1043 = vmatmul.mubr.bf16.gmra.mrb[0].mxu0 %v939
      %v1044 = vpop.f32.mrb[0].mxu0
      %v1045 = vadd.f32 %v961, %v1044
      %v1046 = vpop.f32.mrb[0].mxu0
      %v1047 = vpop.f32.mrb[0].mxu0
      %v1048 = vadd.f32 %v961, %v1047
      %v1049 = vpop.f32.mrb[0].mxu0
      %1050 = vdwg.mxu0
      %v1051 = vtanh.pop %v1045
      %v1052 = vtanh.pop %v1048
      %v1053 = vpack.c.bf16 %v1052, %v1051
      %1054 = vmatprep.subr.bf16.mxu0 0
      %1055 = vmatpush1.bf16.msra.mxu0 %v1053
      %1056 = vmatprep.subr.bf16.mxu0 0
      %1057 = vmatpush1.bf16.msra.mxu0 0
      %1058 = vmatprep.subr.bf16.mxu0 0
      %1059 = vmatpush1.bf16.msra.mxu0 0
      %1060 = vmatprep.subr.bf16.mxu0 0
      %1061 = vmatpush1.bf16.msra.mxu0 0
      %1062 = vmatprep.subr.bf16.mxu0 0
      %1063 = vmatpush1.bf16.msra.mxu0 0
      %1064 = vmatprep.subr.bf16.mxu0 0
      %1065 = vmatpush1.bf16.msra.mxu0 0
      %1066 = vmatprep.subr.bf16.mxu0 0
      %1067 = vmatpush1.bf16.msra.mxu0 0
      %1068 = vmatprep.subr.bf16.mxu0 0
      %1069 = vmatpush1.bf16.msra.mxu0 0
      %1070 = vmatprep.subr.bf16.mxu0 0
      %1071 = vmatpush1.bf16.msra.mxu0 0
      %1072 = vmatprep.subr.bf16.mxu0 0
      %1073 = vmatpush1.bf16.msra.mxu0 0
      %1074 = vmatprep.subr.bf16.mxu0 0
      %1075 = vmatpush1.bf16.msra.mxu0 0
      %1076 = vmatprep.subr.bf16.mxu0 0
      %1077 = vmatpush1.bf16.msra.mxu0 0
      %1078 = vmatprep.subr.bf16.mxu0 0
      %1079 = vmatpush1.bf16.msra.mxu0 0
      %1080 = vmatprep.subr.bf16.mxu0 0
      %1081 = vmatpush1.bf16.msra.mxu0 0
      %1082 = vmatprep.subr.bf16.mxu0 0
      %1083 = vmatpush1.bf16.msra.mxu0 0
      %1084 = vmatprep.subr.bf16.mxu0 0
      %1085 = vmatpush1.bf16.msra.mxu0 0
      %1086 = vmatprep.mubr.bf16.mxu0 0
      %1087 = vmatmul.mubr.bf16.gmra.mrb[0].mxu0 %v554
      %v1088 = vpop.f32.mrb[0].mxu0
      %v1089 = vadd.f32 0.0, %v1088
      %v1090 = vpop.f32.mrb[0].mxu0
      %v1091 = vpop.f32.mrb[0].mxu0
      %v1092 = vadd.f32 0.0, %v1091
      %v1093 = vpop.f32.mrb[0].mxu0
      %1094 = vdwg.mxu0
      %1097 = vrot.lane.b32.xlu0 %v1051, 64
      %v1098 = vpop.permute.xlu0 %1097
      %1099 = vrot.lane.b32.xlu0 %v1052, 64
      %v1100 = vpop.permute.xlu0 %1099
      %v1103 = vsel %vm605, %v1089, %v1098
      %v1104 = vsel %vm605, %v1092, %v1100
      %v1105 = vpack.c.bf16 %v1104, %v1103
      %s1106 = scalar_lea.vmem %s2, 192
      %v1107 = vld [vmem:[%s1106] sm:$0xf]
      %v1108 = vld [vmem:[%s1106 + $0x4] sm:$0xf]
      %v1109 = vld [vmem:[%s1106 + $0x8] sm:$0xf]
      %v1110 = vld [vmem:[%s1106 + $0xc] sm:$0xf]
      %v1111 = vld [vmem:[%s1106 + $0x10] sm:$0xf]
      %v1112 = vld [vmem:[%s1106 + $0x14] sm:$0xf]
      %v1113 = vld [vmem:[%s1106 + $0x18] sm:$0xf]
      %v1114 = vld [vmem:[%s1106 + $0x1c] sm:$0xf]
      %v1115 = vld [vmem:[%s1106 + $0x20] sm:$0xf]
      %v1116 = vld [vmem:[%s1106 + $0x24] sm:$0xf]
      %v1117 = vld [vmem:[%s1106 + $0x28] sm:$0xf]
      %v1118 = vld [vmem:[%s1106 + $0x2c] sm:$0xf]
      %v1119 = vld [vmem:[%s1106 + $0x30] sm:$0xf]
      %v1120 = vld [vmem:[%s1106 + $0x34] sm:$0xf]
      %v1121 = vld [vmem:[%s1106 + $0x38] sm:$0xf]
      %v1122 = vld [vmem:[%s1106 + $0x3c] sm:$0xf]
      %v1123 = vld [vmem:[%s3 + $0x3] sm:$0x1]
      %v1124 = vlaneseq
      %v1125 = vshrl.u32 %v1124, 7
      %v1126 = vsub.s32 0, %v1125
      %v1127 = vrot.slane %v1123, %v1126
      %v1144 = vunpack.c.l.b16 %v1107
      %v1145 = vunpack.c.l.b16 %v1108
      %v1146 = vunpack.c.l.b16 %v1109
      %v1147 = vunpack.c.l.b16 %v1110
      %v1148 = vunpack.c.l.b16 %v1111
      %v1149 = vunpack.c.l.b16 %v1112
      %v1150 = vunpack.c.l.b16 %v1113
      %v1151 = vunpack.c.l.b16 %v1114
      %v1152 = vunpack.c.l.b16 %v1115
      %v1153 = vunpack.c.l.b16 %v1116
      %v1154 = vunpack.c.l.b16 %v1117
      %v1155 = vunpack.c.l.b16 %v1118
      %v1156 = vunpack.c.l.b16 %v1119
      %v1157 = vunpack.c.l.b16 %v1120
      %v1158 = vunpack.c.l.b16 %v1121
      %v1159 = vunpack.c.l.b16 %v1122
      %v1160 = vpack.c.b16 %v1145, %v1144
      %v1161 = vpack.c.b16 %v1147, %v1146
      %v1162 = vpack.c.b16 %v1149, %v1148
      %v1163 = vpack.c.b16 %v1151, %v1150
      %v1164 = vpack.c.b16 %v1153, %v1152
      %v1165 = vpack.c.b16 %v1155, %v1154
      %v1166 = vpack.c.b16 %v1157, %v1156
      %v1167 = vpack.c.b16 %v1159, %v1158
      %1176 = vmatprep.subr.bf16.mxu0 0
      %1177 = vmatpush1.bf16.msra.mxu0 %v1160
      %1178 = vmatprep.subr.bf16.mxu0 0
      %1179 = vmatpush1.bf16.msra.mxu0 %v1161
      %1180 = vmatprep.subr.bf16.mxu0 0
      %1181 = vmatpush1.bf16.msra.mxu0 %v1162
      %1182 = vmatprep.subr.bf16.mxu0 0
      %1183 = vmatpush1.bf16.msra.mxu0 %v1163
      %1184 = vmatprep.subr.bf16.mxu0 0
      %1185 = vmatpush1.bf16.msra.mxu0 %v1164
      %1186 = vmatprep.subr.bf16.mxu0 0
      %1187 = vmatpush1.bf16.msra.mxu0 %v1165
      %1188 = vmatprep.subr.bf16.mxu0 0
      %1189 = vmatpush1.bf16.msra.mxu0 %v1166
      %1190 = vmatprep.subr.bf16.mxu0 0
      %1191 = vmatpush1.bf16.msra.mxu0 %v1167
      %1192 = vmatprep.subr.bf16.mxu0 0
      %1193 = vmatpush1.bf16.msra.mxu0 0
      %1194 = vmatprep.subr.bf16.mxu0 0
      %1195 = vmatpush1.bf16.msra.mxu0 0
      %1196 = vmatprep.subr.bf16.mxu0 0
      %1197 = vmatpush1.bf16.msra.mxu0 0
      %1198 = vmatprep.subr.bf16.mxu0 0
      %1199 = vmatpush1.bf16.msra.mxu0 0
      %1200 = vmatprep.subr.bf16.mxu0 0
      %1201 = vmatpush1.bf16.msra.mxu0 0
      %1202 = vmatprep.subr.bf16.mxu0 0
      %1203 = vmatpush1.bf16.msra.mxu0 0
      %1204 = vmatprep.subr.bf16.mxu0 0
      %1205 = vmatpush1.bf16.msra.mxu0 0
      %1206 = vmatprep.subr.bf16.mxu0 0
      %1207 = vmatpush1.bf16.msra.mxu0 0
      %1208 = vmatprep.mubr.bf16.mxu0 0
      %1209 = vmatmul.mubr.bf16.gmra.mrb[0].mxu0 %v1105
      %v1210 = vpop.f32.mrb[0].mxu0
      %v1211 = vadd.f32 %v1127, %v1210
      %v1212 = vpop.f32.mrb[0].mxu0
      %v1213 = vpop.f32.mrb[0].mxu0
      %v1214 = vadd.f32 %v1127, %v1213
      %v1215 = vpop.f32.mrb[0].mxu0
      %1216 = vdwg.mxu0
      %v1217 = vtanh.pop %v1211
      %v1218 = vtanh.pop %v1214
      %v1219 = vpack.c.bf16 %v1218, %v1217
      %1220 = vmatprep.subr.bf16.mxu0 0
      %1221 = vmatpush1.bf16.msra.mxu0 %v1219
      %1222 = vmatprep.subr.bf16.mxu0 0
      %1223 = vmatpush1.bf16.msra.mxu0 0
      %1224 = vmatprep.subr.bf16.mxu0 0
      %1225 = vmatpush1.bf16.msra.mxu0 0
      %1226 = vmatprep.subr.bf16.mxu0 0
      %1227 = vmatpush1.bf16.msra.mxu0 0
      %1228 = vmatprep.subr.bf16.mxu0 0
      %1229 = vmatpush1.bf16.msra.mxu0 0
      %1230 = vmatprep.subr.bf16.mxu0 0
      %1231 = vmatpush1.bf16.msra.mxu0 0
      %1232 = vmatprep.subr.bf16.mxu0 0
      %1233 = vmatpush1.bf16.msra.mxu0 0
      %1234 = vmatprep.subr.bf16.mxu0 0
      %1235 = vmatpush1.bf16.msra.mxu0 0
      %1236 = vmatprep.subr.bf16.mxu0 0
      %1237 = vmatpush1.bf16.msra.mxu0 0
      %1238 = vmatprep.subr.bf16.mxu0 0
      %1239 = vmatpush1.bf16.msra.mxu0 0
      %1240 = vmatprep.subr.bf16.mxu0 0
      %1241 = vmatpush1.bf16.msra.mxu0 0
      %1242 = vmatprep.subr.bf16.mxu0 0
      %1243 = vmatpush1.bf16.msra.mxu0 0
      %1244 = vmatprep.subr.bf16.mxu0 0
      %1245 = vmatpush1.bf16.msra.mxu0 0
      %1246 = vmatprep.subr.bf16.mxu0 0
      %1247 = vmatpush1.bf16.msra.mxu0 0
      %1248 = vmatprep.subr.bf16.mxu0 0
      %1249 = vmatpush1.bf16.msra.mxu0 0
      %1250 = vmatprep.subr.bf16.mxu0 0
      %1251 = vmatpush1.bf16.msra.mxu0 0
      %1252 = vmatprep.mubr.bf16.mxu0 0
      %1253 = vmatmul.mubr.bf16.gmra.mrb[0].mxu0 %v554
      %v1254 = vpop.f32.mrb[0].mxu0
      %v1255 = vadd.f32 0.0, %v1254
      %v1256 = vpop.f32.mrb[0].mxu0
      %v1257 = vpop.f32.mrb[0].mxu0
      %v1258 = vadd.f32 0.0, %v1257
      %v1259 = vpop.f32.mrb[0].mxu0
      %1260 = vdwg.mxu0
      %1263 = vrot.lane.b32.xlu0 %v1217, 64
      %v1264 = vpop.permute.xlu0 %1263
      %1265 = vrot.lane.b32.xlu0 %v1218, 64
      %v1266 = vpop.permute.xlu0 %1265
      %v1269 = vsel %vm605, %v1255, %v1264
      %v1270 = vsel %vm605, %v1258, %v1266
      %v1271 = vpack.c.bf16 %v1270, %v1269
      %s1272 = scalar_lea.vmem %s2, 256
      %v1273 = vld [vmem:[%s1272] sm:$0xf]
      %v1274 = vld [vmem:[%s1272 + $0x4] sm:$0xf]
      %v1275 = vld [vmem:[%s1272 + $0x8] sm:$0xf]
      %v1276 = vld [vmem:[%s1272 + $0xc] sm:$0xf]
      %v1277 = vld [vmem:[%s1272 + $0x10] sm:$0xf]
      %v1278 = vld [vmem:[%s1272 + $0x14] sm:$0xf]
      %v1279 = vld [vmem:[%s1272 + $0x18] sm:$0xf]
      %v1280 = vld [vmem:[%s1272 + $0x1c] sm:$0xf]
      %v1281 = vld [vmem:[%s1272 + $0x20] sm:$0xf]
      %v1282 = vld [vmem:[%s1272 + $0x24] sm:$0xf]
      %v1283 = vld [vmem:[%s1272 + $0x28] sm:$0xf]
      %v1284 = vld [vmem:[%s1272 + $0x2c] sm:$0xf]
      %v1285 = vld [vmem:[%s1272 + $0x30] sm:$0xf]
      %v1286 = vld [vmem:[%s1272 + $0x34] sm:$0xf]
      %v1287 = vld [vmem:[%s1272 + $0x38] sm:$0xf]
      %v1288 = vld [vmem:[%s1272 + $0x3c] sm:$0xf]
      %v1289 = vld [vmem:[%s3 + $0x4] sm:$0x1]
      %v1290 = vlaneseq
      %v1291 = vshrl.u32 %v1290, 7
      %v1292 = vsub.s32 0, %v1291
      %v1293 = vrot.slane %v1289, %v1292
      %v1310 = vunpack.c.l.b16 %v1273
      %v1311 = vunpack.c.l.b16 %v1274
      %v1312 = vunpack.c.l.b16 %v1275
      %v1313 = vunpack.c.l.b16 %v1276
      %v1314 = vunpack.c.l.b16 %v1277
      %v1315 = vunpack.c.l.b16 %v1278
      %v1316 = vunpack.c.l.b16 %v1279
      %v1317 = vunpack.c.l.b16 %v1280
      %v1318 = vunpack.c.l.b16 %v1281
      %v1319 = vunpack.c.l.b16 %v1282
      %v1320 = vunpack.c.l.b16 %v1283
      %v1321 = vunpack.c.l.b16 %v1284
      %v1322 = vunpack.c.l.b16 %v1285
      %v1323 = vunpack.c.l.b16 %v1286
      %v1324 = vunpack.c.l.b16 %v1287
      %v1325 = vunpack.c.l.b16 %v1288
      %v1326 = vpack.c.b16 %v1311, %v1310
      %v1327 = vpack.c.b16 %v1313, %v1312
      %v1328 = vpack.c.b16 %v1315, %v1314
      %v1329 = vpack.c.b16 %v1317, %v1316
      %v1330 = vpack.c.b16 %v1319, %v1318
      %v1331 = vpack.c.b16 %v1321, %v1320
      %v1332 = vpack.c.b16 %v1323, %v1322
      %v1333 = vpack.c.b16 %v1325, %v1324
      %1342 = vmatprep.subr.bf16.mxu0 0
      %1343 = vmatpush1.bf16.msra.mxu0 %v1326
      %1344 = vmatprep.subr.bf16.mxu0 0
      %1345 = vmatpush1.bf16.msra.mxu0 %v1327
      %1346 = vmatprep.subr.bf16.mxu0 0
      %1347 = vmatpush1.bf16.msra.mxu0 %v1328
      %1348 = vmatprep.subr.bf16.mxu0 0
      %1349 = vmatpush1.bf16.msra.mxu0 %v1329
      %1350 = vmatprep.subr.bf16.mxu0 0
      %1351 = vmatpush1.bf16.msra.mxu0 %v1330
      %1352 = vmatprep.subr.bf16.mxu0 0
      %1353 = vmatpush1.bf16.msra.mxu0 %v1331
      %1354 = vmatprep.subr.bf16.mxu0 0
      %1355 = vmatpush1.bf16.msra.mxu0 %v1332
      %1356 = vmatprep.subr.bf16.mxu0 0
      %1357 = vmatpush1.bf16.msra.mxu0 %v1333
      %1358 = vmatprep.subr.bf16.mxu0 0
      %1359 = vmatpush1.bf16.msra.mxu0 0
      %1360 = vmatprep.subr.bf16.mxu0 0
      %1361 = vmatpush1.bf16.msra.mxu0 0
      %1362 = vmatprep.subr.bf16.mxu0 0
      %1363 = vmatpush1.bf16.msra.mxu0 0
      %1364 = vmatprep.subr.bf16.mxu0 0
      %1365 = vmatpush1.bf16.msra.mxu0 0
      %1366 = vmatprep.subr.bf16.mxu0 0
      %1367 = vmatpush1.bf16.msra.mxu0 0
      %1368 = vmatprep.subr.bf16.mxu0 0
      %1369 = vmatpush1.bf16.msra.mxu0 0
      %1370 = vmatprep.subr.bf16.mxu0 0
      %1371 = vmatpush1.bf16.msra.mxu0 0
      %1372 = vmatprep.subr.bf16.mxu0 0
      %1373 = vmatpush1.bf16.msra.mxu0 0
      %1374 = vmatprep.mubr.bf16.mxu0 0
      %1375 = vmatmul.mubr.bf16.gmra.mrb[0].mxu0 %v1271
      %v1376 = vpop.f32.mrb[0].mxu0
      %v1377 = vadd.f32 %v1293, %v1376
      %v1378 = vpop.f32.mrb[0].mxu0
      %v1379 = vpop.f32.mrb[0].mxu0
      %v1380 = vadd.f32 %v1293, %v1379
      %v1381 = vpop.f32.mrb[0].mxu0
      %1382 = vdwg.mxu0
      %v1383 = vtanh.pop %v1377
      %v1384 = vtanh.pop %v1380
      %v1385 = vadd.f32 %v1383, %v1051
      %v1386 = vadd.f32 %v1384, %v1052
      %v1387 = vpack.c.bf16 %v1386, %v1385
      %1388 = vmatprep.subr.bf16.mxu0 0
      %1389 = vmatpush1.bf16.msra.mxu0 %v1387
      %1390 = vmatprep.subr.bf16.mxu0 0
      %1391 = vmatpush1.bf16.msra.mxu0 0
      %1392 = vmatprep.subr.bf16.mxu0 0
      %1393 = vmatpush1.bf16.msra.mxu0 0
      %1394 = vmatprep.subr.bf16.mxu0 0
      %1395 = vmatpush1.bf16.msra.mxu0 0
      %1396 = vmatprep.subr.bf16.mxu0 0
      %1397 = vmatpush1.bf16.msra.mxu0 0
      %1398 = vmatprep.subr.bf16.mxu0 0
      %1399 = vmatpush1.bf16.msra.mxu0 0
      %1400 = vmatprep.subr.bf16.mxu0 0
      %1401 = vmatpush1.bf16.msra.mxu0 0
      %1402 = vmatprep.subr.bf16.mxu0 0
      %1403 = vmatpush1.bf16.msra.mxu0 0
      %1404 = vmatprep.subr.bf16.mxu0 0
      %1405 = vmatpush1.bf16.msra.mxu0 0
      %1406 = vmatprep.subr.bf16.mxu0 0
      %1407 = vmatpush1.bf16.msra.mxu0 0
      %1408 = vmatprep.subr.bf16.mxu0 0
      %1409 = vmatpush1.bf16.msra.mxu0 0
      %1410 = vmatprep.subr.bf16.mxu0 0
      %1411 = vmatpush1.bf16.msra.mxu0 0
      %1412 = vmatprep.subr.bf16.mxu0 0
      %1413 = vmatpush1.bf16.msra.mxu0 0
      %1414 = vmatprep.subr.bf16.mxu0 0
      %1415 = vmatpush1.bf16.msra.mxu0 0
      %1416 = vmatprep.subr.bf16.mxu0 0
      %1417 = vmatpush1.bf16.msra.mxu0 0
      %1418 = vmatprep.subr.bf16.mxu0 0
      %1419 = vmatpush1.bf16.msra.mxu0 0
      %1420 = vmatprep.mubr.bf16.mxu0 0
      %1421 = vmatmul.mubr.bf16.gmra.mrb[0].mxu0 %v554
      %v1422 = vpop.f32.mrb[0].mxu0
      %v1423 = vadd.f32 0.0, %v1422
      %v1424 = vpop.f32.mrb[0].mxu0
      %v1425 = vpop.f32.mrb[0].mxu0
      %v1426 = vadd.f32 0.0, %v1425
      %v1427 = vpop.f32.mrb[0].mxu0
      %1428 = vdwg.mxu0
      %1431 = vrot.lane.b32.xlu0 %v1385, 64
      %v1432 = vpop.permute.xlu0 %1431
      %1433 = vrot.lane.b32.xlu0 %v1386, 64
      %v1434 = vpop.permute.xlu0 %1433
      %v1437 = vsel %vm605, %v1423, %v1432
      %v1438 = vsel %vm605, %v1426, %v1434
      %v1439 = vpack.c.bf16 %v1438, %v1437
      %s1440 = scalar_lea.vmem %s2, 320
      %v1441 = vld [vmem:[%s1440] sm:$0xf]
      %v1442 = vld [vmem:[%s1440 + $0x4] sm:$0xf]
      %v1443 = vld [vmem:[%s1440 + $0x8] sm:$0xf]
      %v1444 = vld [vmem:[%s1440 + $0xc] sm:$0xf]
      %v1445 = vld [vmem:[%s1440 + $0x10] sm:$0xf]
      %v1446 = vld [vmem:[%s1440 + $0x14] sm:$0xf]
      %v1447 = vld [vmem:[%s1440 + $0x18] sm:$0xf]
      %v1448 = vld [vmem:[%s1440 + $0x1c] sm:$0xf]
      %v1449 = vld [vmem:[%s1440 + $0x20] sm:$0xf]
      %v1450 = vld [vmem:[%s1440 + $0x24] sm:$0xf]
      %v1451 = vld [vmem:[%s1440 + $0x28] sm:$0xf]
      %v1452 = vld [vmem:[%s1440 + $0x2c] sm:$0xf]
      %v1453 = vld [vmem:[%s1440 + $0x30] sm:$0xf]
      %v1454 = vld [vmem:[%s1440 + $0x34] sm:$0xf]
      %v1455 = vld [vmem:[%s1440 + $0x38] sm:$0xf]
      %v1456 = vld [vmem:[%s1440 + $0x3c] sm:$0xf]
      %v1457 = vld [vmem:[%s3 + $0x5] sm:$0x1]
      %v1458 = vlaneseq
      %v1459 = vshrl.u32 %v1458, 7
      %v1460 = vsub.s32 0, %v1459
      %v1461 = vrot.slane %v1457, %v1460
      %v1478 = vunpack.c.l.b16 %v1441
      %v1479 = vunpack.c.l.b16 %v1442
      %v1480 = vunpack.c.l.b16 %v1443
      %v1481 = vunpack.c.l.b16 %v1444
      %v1482 = vunpack.c.l.b16 %v1445
      %v1483 = vunpack.c.l.b16 %v1446
      %v1484 = vunpack.c.l.b16 %v1447
      %v1485 = vunpack.c.l.b16 %v1448
      %v1486 = vunpack.c.l.b16 %v1449
      %v1487 = vunpack.c.l.b16 %v1450
      %v1488 = vunpack.c.l.b16 %v1451
      %v1489 = vunpack.c.l.b16 %v1452
      %v1490 = vunpack.c.l.b16 %v1453
      %v1491 = vunpack.c.l.b16 %v1454
      %v1492 = vunpack.c.l.b16 %v1455
      %v1493 = vunpack.c.l.b16 %v1456
      %v1494 = vpack.c.b16 %v1479, %v1478
      %v1495 = vpack.c.b16 %v1481, %v1480
      %v1496 = vpack.c.b16 %v1483, %v1482
      %v1497 = vpack.c.b16 %v1485, %v1484
      %v1498 = vpack.c.b16 %v1487, %v1486
      %v1499 = vpack.c.b16 %v1489, %v1488
      %v1500 = vpack.c.b16 %v1491, %v1490
      %v1501 = vpack.c.b16 %v1493, %v1492
      %1510 = vmatprep.subr.bf16.mxu0 0
      %1511 = vmatpush1.bf16.msra.mxu0 %v1494
      %1512 = vmatprep.subr.bf16.mxu0 0
      %1513 = vmatpush1.bf16.msra.mxu0 %v1495
      %1514 = vmatprep.subr.bf16.mxu0 0
      %1515 = vmatpush1.bf16.msra.mxu0 %v1496
      %1516 = vmatprep.subr.bf16.mxu0 0
      %1517 = vmatpush1.bf16.msra.mxu0 %v1497
      %1518 = vmatprep.subr.bf16.mxu0 0
      %1519 = vmatpush1.bf16.msra.mxu0 %v1498
      %1520 = vmatprep.subr.bf16.mxu0 0
      %1521 = vmatpush1.bf16.msra.mxu0 %v1499
      %1522 = vmatprep.subr.bf16.mxu0 0
      %1523 = vmatpush1.bf16.msra.mxu0 %v1500
      %1524 = vmatprep.subr.bf16.mxu0 0
      %1525 = vmatpush1.bf16.msra.mxu0 %v1501
      %1526 = vmatprep.subr.bf16.mxu0 0
      %1527 = vmatpush1.bf16.msra.mxu0 0
      %1528 = vmatprep.subr.bf16.mxu0 0
      %1529 = vmatpush1.bf16.msra.mxu0 0
      %1530 = vmatprep.subr.bf16.mxu0 0
      %1531 = vmatpush1.bf16.msra.mxu0 0
      %1532 = vmatprep.subr.bf16.mxu0 0
      %1533 = vmatpush1.bf16.msra.mxu0 0
      %1534 = vmatprep.subr.bf16.mxu0 0
      %1535 = vmatpush1.bf16.msra.mxu0 0
      %1536 = vmatprep.subr.bf16.mxu0 0
      %1537 = vmatpush1.bf16.msra.mxu0 0
      %1538 = vmatprep.subr.bf16.mxu0 0
      %1539 = vmatpush1.bf16.msra.mxu0 0
      %1540 = vmatprep.subr.bf16.mxu0 0
      %1541 = vmatpush1.bf16.msra.mxu0 0
      %1542 = vmatprep.mubr.bf16.mxu0 0
      %1543 = vmatmul.mubr.bf16.gmra.mrb[0].mxu0 %v1439
      %v1544 = vpop.f32.mrb[0].mxu0
      %v1545 = vadd.f32 %v1461, %v1544
      %v1546 = vpop.f32.mrb[0].mxu0
      %v1547 = vpop.f32.mrb[0].mxu0
      %v1548 = vadd.f32 %v1461, %v1547
      %v1549 = vpop.f32.mrb[0].mxu0
      %1550 = vdwg.mxu0
      %v1551 = vtanh.pop %v1545
      %v1552 = vtanh.pop %v1548
      %v1553 = vadd.f32 %v1551, %v885
      %v1554 = vadd.f32 %v1552, %v886
      %v1555 = vpack.c.bf16 %v1554, %v1553
      %1556 = vmatprep.subr.bf16.mxu0 0
      %1557 = vmatpush1.bf16.msra.mxu0 %v1555
      %1558 = vmatprep.subr.bf16.mxu0 0
      %1559 = vmatpush1.bf16.msra.mxu0 0
      %1560 = vmatprep.subr.bf16.mxu0 0
      %1561 = vmatpush1.bf16.msra.mxu0 0
      %1562 = vmatprep.subr.bf16.mxu0 0
      %1563 = vmatpush1.bf16.msra.mxu0 0
      %1564 = vmatprep.subr.bf16.mxu0 0
      %1565 = vmatpush1.bf16.msra.mxu0 0
      %1566 = vmatprep.subr.bf16.mxu0 0
      %1567 = vmatpush1.bf16.msra.mxu0 0
      %1568 = vmatprep.subr.bf16.mxu0 0
      %1569 = vmatpush1.bf16.msra.mxu0 0
      %1570 = vmatprep.subr.bf16.mxu0 0
      %1571 = vmatpush1.bf16.msra.mxu0 0
      %1572 = vmatprep.subr.bf16.mxu0 0
      %1573 = vmatpush1.bf16.msra.mxu0 0
      %1574 = vmatprep.subr.bf16.mxu0 0
      %1575 = vmatpush1.bf16.msra.mxu0 0
      %1576 = vmatprep.subr.bf16.mxu0 0
      %1577 = vmatpush1.bf16.msra.mxu0 0
      %1578 = vmatprep.subr.bf16.mxu0 0
      %1579 = vmatpush1.bf16.msra.mxu0 0
      %1580 = vmatprep.subr.bf16.mxu0 0
      %1581 = vmatpush1.bf16.msra.mxu0 0
      %1582 = vmatprep.subr.bf16.mxu0 0
      %1583 = vmatpush1.bf16.msra.mxu0 0
      %1584 = vmatprep.subr.bf16.mxu0 0
      %1585 = vmatpush1.bf16.msra.mxu0 0
      %1586 = vmatprep.subr.bf16.mxu0 0
      %1587 = vmatpush1.bf16.msra.mxu0 0
      %1588 = vmatprep.mubr.bf16.mxu0 0
      %1589 = vmatmul.mubr.bf16.gmra.mrb[0].mxu0 %v554
      %v1590 = vpop.f32.mrb[0].mxu0
      %v1591 = vadd.f32 0.0, %v1590
      %v1592 = vpop.f32.mrb[0].mxu0
      %v1593 = vpop.f32.mrb[0].mxu0
      %v1594 = vadd.f32 0.0, %v1593
      %v1595 = vpop.f32.mrb[0].mxu0
      %1596 = vdwg.mxu0
      %1599 = vrot.lane.b32.xlu0 %v1553, 64
      %v1600 = vpop.permute.xlu0 %1599
      %1601 = vrot.lane.b32.xlu0 %v1554, 64
      %v1602 = vpop.permute.xlu0 %1601
      %v1605 = vsel %vm605, %v1591, %v1600
      %v1606 = vsel %vm605, %v1594, %v1602
      %v1607 = vpack.c.bf16 %v1606, %v1605
      %s1608 = scalar_lea.vmem %s2, 384
      %v1609 = vld [vmem:[%s1608] sm:$0xf]
      %v1610 = vld [vmem:[%s1608 + $0x4] sm:$0xf]
      %v1611 = vld [vmem:[%s1608 + $0x8] sm:$0xf]
      %v1612 = vld [vmem:[%s1608 + $0xc] sm:$0xf]
      %v1613 = vld [vmem:[%s1608 + $0x10] sm:$0xf]
      %v1614 = vld [vmem:[%s1608 + $0x14] sm:$0xf]
      %v1615 = vld [vmem:[%s1608 + $0x18] sm:$0xf]
      %v1616 = vld [vmem:[%s1608 + $0x1c] sm:$0xf]
      %v1617 = vld [vmem:[%s1608 + $0x20] sm:$0xf]
      %v1618 = vld [vmem:[%s1608 + $0x24] sm:$0xf]
      %v1619 = vld [vmem:[%s1608 + $0x28] sm:$0xf]
      %v1620 = vld [vmem:[%s1608 + $0x2c] sm:$0xf]
      %v1621 = vld [vmem:[%s1608 + $0x30] sm:$0xf]
      %v1622 = vld [vmem:[%s1608 + $0x34] sm:$0xf]
      %v1623 = vld [vmem:[%s1608 + $0x38] sm:$0xf]
      %v1624 = vld [vmem:[%s1608 + $0x3c] sm:$0xf]
      %v1625 = vld [vmem:[%s3 + $0x6] sm:$0x1]
      %v1626 = vlaneseq
      %v1627 = vshrl.u32 %v1626, 7
      %v1628 = vsub.s32 0, %v1627
      %v1629 = vrot.slane %v1625, %v1628
      %v1646 = vunpack.c.l.b16 %v1609
      %v1647 = vunpack.c.l.b16 %v1610
      %v1648 = vunpack.c.l.b16 %v1611
      %v1649 = vunpack.c.l.b16 %v1612
      %v1650 = vunpack.c.l.b16 %v1613
      %v1651 = vunpack.c.l.b16 %v1614
      %v1652 = vunpack.c.l.b16 %v1615
      %v1653 = vunpack.c.l.b16 %v1616
      %v1654 = vunpack.c.l.b16 %v1617
      %v1655 = vunpack.c.l.b16 %v1618
      %v1656 = vunpack.c.l.b16 %v1619
      %v1657 = vunpack.c.l.b16 %v1620
      %v1658 = vunpack.c.l.b16 %v1621
      %v1659 = vunpack.c.l.b16 %v1622
      %v1660 = vunpack.c.l.b16 %v1623
      %v1661 = vunpack.c.l.b16 %v1624
      %v1662 = vpack.c.b16 %v1647, %v1646
      %v1663 = vpack.c.b16 %v1649, %v1648
      %v1664 = vpack.c.b16 %v1651, %v1650
      %v1665 = vpack.c.b16 %v1653, %v1652
      %v1666 = vpack.c.b16 %v1655, %v1654
      %v1667 = vpack.c.b16 %v1657, %v1656
      %v1668 = vpack.c.b16 %v1659, %v1658
      %v1669 = vpack.c.b16 %v1661, %v1660
      %1678 = vmatprep.subr.bf16.mxu0 0
      %1679 = vmatpush1.bf16.msra.mxu0 %v1662
      %1680 = vmatprep.subr.bf16.mxu0 0
      %1681 = vmatpush1.bf16.msra.mxu0 %v1663
      %1682 = vmatprep.subr.bf16.mxu0 0
      %1683 = vmatpush1.bf16.msra.mxu0 %v1664
      %1684 = vmatprep.subr.bf16.mxu0 0
      %1685 = vmatpush1.bf16.msra.mxu0 %v1665
      %1686 = vmatprep.subr.bf16.mxu0 0
      %1687 = vmatpush1.bf16.msra.mxu0 %v1666
      %1688 = vmatprep.subr.bf16.mxu0 0
      %1689 = vmatpush1.bf16.msra.mxu0 %v1667
      %1690 = vmatprep.subr.bf16.mxu0 0
      %1691 = vmatpush1.bf16.msra.mxu0 %v1668
      %1692 = vmatprep.subr.bf16.mxu0 0
      %1693 = vmatpush1.bf16.msra.mxu0 %v1669
      %1694 = vmatprep.subr.bf16.mxu0 0
      %1695 = vmatpush1.bf16.msra.mxu0 0
      %1696 = vmatprep.subr.bf16.mxu0 0
      %1697 = vmatpush1.bf16.msra.mxu0 0
      %1698 = vmatprep.subr.bf16.mxu0 0
      %1699 = vmatpush1.bf16.msra.mxu0 0
      %1700 = vmatprep.subr.bf16.mxu0 0
      %1701 = vmatpush1.bf16.msra.mxu0 0
      %1702 = vmatprep.subr.bf16.mxu0 0
      %1703 = vmatpush1.bf16.msra.mxu0 0
      %1704 = vmatprep.subr.bf16.mxu0 0
      %1705 = vmatpush1.bf16.msra.mxu0 0
      %1706 = vmatprep.subr.bf16.mxu0 0
      %1707 = vmatpush1.bf16.msra.mxu0 0
      %1708 = vmatprep.subr.bf16.mxu0 0
      %1709 = vmatpush1.bf16.msra.mxu0 0
      %1710 = vmatprep.mubr.bf16.mxu0 0
      %1711 = vmatmul.mubr.bf16.gmra.mrb[0].mxu0 %v1607
      %v1712 = vpop.f32.mrb[0].mxu0
      %v1713 = vadd.f32 %v1629, %v1712
      %v1714 = vpop.f32.mrb[0].mxu0
      %v1715 = vpop.f32.mrb[0].mxu0
      %v1716 = vadd.f32 %v1629, %v1715
      %v1717 = vpop.f32.mrb[0].mxu0
      %1718 = vdwg.mxu0
      %v1719 = vtanh.pop %v1713
      %v1720 = vtanh.pop %v1716
      %v1721 = vadd.f32 %v1719, %v719
      %v1722 = vadd.f32 %v1720, %v720
      %s1723 = scalar_lea.vmem %s2, 448
      %v1724 = vld [vmem:[%s1723] sm:$0xf]
      %v1725 = vld [vmem:[%s1723 + $0x4] sm:$0xf]
      %v1726 = vld [vmem:[%s1723 + $0x8] sm:$0xf]
      %v1727 = vld [vmem:[%s1723 + $0xc] sm:$0xf]
      %v1728 = vld [vmem:[%s1723 + $0x10] sm:$0xf]
      %v1729 = vld [vmem:[%s1723 + $0x14] sm:$0xf]
      %v1730 = vld [vmem:[%s1723 + $0x18] sm:$0xf]
      %v1731 = vld [vmem:[%s1723 + $0x1c] sm:$0xf]
      %v1732 = vpack.c.bf16 %v1722, %v1721
      %v1733 = vld [vmem:[%s3 + $0x7] sm:$0x1]
      %v1734 = vlaneseq
      %v1735 = vshrl.u32 %v1734, 7
      %v1736 = vsub.s32 0, %v1735
      %v1737 = vrot.slane %v1733, %v1736
      %v1746 = vunpack.c.l.b16 %v1724
      %v1747 = vunpack.c.l.b16 %v1725
      %v1748 = vunpack.c.l.b16 %v1726
      %v1749 = vunpack.c.l.b16 %v1727
      %v1750 = vunpack.c.l.b16 %v1728
      %v1751 = vunpack.c.l.b16 %v1729
      %v1752 = vunpack.c.l.b16 %v1730
      %v1753 = vunpack.c.l.b16 %v1731
      %v1754 = vpack.c.b16 %v1747, %v1746
      %v1755 = vpack.c.b16 %v1749, %v1748
      %v1756 = vpack.c.b16 %v1751, %v1750
      %v1757 = vpack.c.b16 %v1753, %v1752
      %v1763 = vsel %vm605, %v1732, 0
      %1765 = vmatprep.subr.bf16.mxu0 0
      %1766 = vmatpush1.bf16.msra.mxu0 %v1754
      %1767 = vmatprep.subr.bf16.mxu0 0
      %1768 = vmatpush1.bf16.msra.mxu0 %v1755
      %1769 = vmatprep.subr.bf16.mxu0 0
      %1770 = vmatpush1.bf16.msra.mxu0 %v1756
      %1771 = vmatprep.subr.bf16.mxu0 0
      %1772 = vmatpush1.bf16.msra.mxu0 %v1757
      %1773 = vmatprep.subr.bf16.mxu0 0
      %1774 = vmatpush1.bf16.msra.mxu0 0
      %1775 = vmatprep.subr.bf16.mxu0 0
      %1776 = vmatpush1.bf16.msra.mxu0 0
      %1777 = vmatprep.subr.bf16.mxu0 0
      %1778 = vmatpush1.bf16.msra.mxu0 0
      %1779 = vmatprep.subr.bf16.mxu0 0
      %1780 = vmatpush1.bf16.msra.mxu0 0
      %1781 = vmatprep.subr.bf16.mxu0 0
      %1782 = vmatpush1.bf16.msra.mxu0 0
      %1783 = vmatprep.subr.bf16.mxu0 0
      %1784 = vmatpush1.bf16.msra.mxu0 0
      %1785 = vmatprep.subr.bf16.mxu0 0
      %1786 = vmatpush1.bf16.msra.mxu0 0
      %1787 = vmatprep.subr.bf16.mxu0 0
      %1788 = vmatpush1.bf16.msra.mxu0 0
      %1789 = vmatprep.subr.bf16.mxu0 0
      %1790 = vmatpush1.bf16.msra.mxu0 0
      %1791 = vmatprep.subr.bf16.mxu0 0
      %1792 = vmatpush1.bf16.msra.mxu0 0
      %1793 = vmatprep.subr.bf16.mxu0 0
      %1794 = vmatpush1.bf16.msra.mxu0 0
      %1795 = vmatprep.subr.bf16.mxu0 0
      %1796 = vmatpush1.bf16.msra.mxu0 0
      %1797 = vmatprep.mubr.bf16.mxu0 0
      %1798 = vmatmul.mubr.bf16.gmra.mrb[0].mxu0 %v1763
      %v1799 = vpop.f32.mrb[0].mxu0
      %v1800 = vadd.f32 %v1737, %v1799
      %v1801 = vpop.f32.mrb[0].mxu0
      %v1802 = vpop.f32.mrb[0].mxu0
      %v1803 = vadd.f32 %v1737, %v1802
      %v1804 = vpop.f32.mrb[0].mxu0
      %1805 = vdwg.mxu0
      %v1806 = vtanh.pop %v1800
      %v1807 = vtanh.pop %v1803
      %s1808 = scalar_lea.vmem %s2, 512
      %v1809 = vld [vmem:[%s1808] sm:$0xf]
      %v1810 = vld [vmem:[%s1808 + $0x4] sm:$0xf]
      %v1811 = vld [vmem:[%s1808 + $0x8] sm:$0xf]
      %v1812 = vld [vmem:[%s1808 + $0xc] sm:$0xf]
      %v1813 = vld [vmem:[%s1808 + $0x10] sm:$0xf]
      %v1814 = vld [vmem:[%s1808 + $0x14] sm:$0xf]
      %v1815 = vld [vmem:[%s1808 + $0x18] sm:$0xf]
      %v1816 = vld [vmem:[%s1808 + $0x1c] sm:$0xf]
      %v1817 = vpack.c.bf16 %v1807, %v1806
      %v1818 = vld [vmem:[%s3 + $0x8] sm:$0x1]
      %v1819 = vlaneseq
      %v1820 = vshrl.u32 %v1819, 7
      %v1821 = vsub.s32 0, %v1820
      %v1822 = vrot.slane %v1818, %v1821
      %v1831 = vunpack.c.l.b16 %v1809
      %v1832 = vunpack.c.l.b16 %v1810
      %v1833 = vunpack.c.l.b16 %v1811
      %v1834 = vunpack.c.l.b16 %v1812
      %v1835 = vunpack.c.l.b16 %v1813
      %v1836 = vunpack.c.l.b16 %v1814
      %v1837 = vunpack.c.l.b16 %v1815
      %v1838 = vunpack.c.l.b16 %v1816
      %v1839 = vpack.c.b16 %v1832, %v1831
      %v1840 = vpack.c.b16 %v1834, %v1833
      %v1841 = vpack.c.b16 %v1836, %v1835
      %v1842 = vpack.c.b16 %v1838, %v1837
      %v1848 = vsel %vm605, %v1817, 0
      %1850 = vmatprep.subr.bf16.mxu0 0
      %1851 = vmatpush1.bf16.msra.mxu0 %v1839
      %1852 = vmatprep.subr.bf16.mxu0 0
      %1853 = vmatpush1.bf16.msra.mxu0 %v1840
      %1854 = vmatprep.subr.bf16.mxu0 0
      %1855 = vmatpush1.bf16.msra.mxu0 %v1841
      %1856 = vmatprep.subr.bf16.mxu0 0
      %1857 = vmatpush1.bf16.msra.mxu0 %v1842
      %1858 = vmatprep.subr.bf16.mxu0 0
      %1859 = vmatpush1.bf16.msra.mxu0 0
      %1860 = vmatprep.subr.bf16.mxu0 0
      %1861 = vmatpush1.bf16.msra.mxu0 0
      %1862 = vmatprep.subr.bf16.mxu0 0
      %1863 = vmatpush1.bf16.msra.mxu0 0
      %1864 = vmatprep.subr.bf16.mxu0 0
      %1865 = vmatpush1.bf16.msra.mxu0 0
      %1866 = vmatprep.subr.bf16.mxu0 0
      %1867 = vmatpush1.bf16.msra.mxu0 0
      %1868 = vmatprep.subr.bf16.mxu0 0
      %1869 = vmatpush1.bf16.msra.mxu0 0
      %1870 = vmatprep.subr.bf16.mxu0 0
      %1871 = vmatpush1.bf16.msra.mxu0 0
      %1872 = vmatprep.subr.bf16.mxu0 0
      %1873 = vmatpush1.bf16.msra.mxu0 0
      %1874 = vmatprep.subr.bf16.mxu0 0
      %1875 = vmatpush1.bf16.msra.mxu0 0
      %1876 = vmatprep.subr.bf16.mxu0 0
      %1877 = vmatpush1.bf16.msra.mxu0 0
      %1878 = vmatprep.subr.bf16.mxu0 0
      %1879 = vmatpush1.bf16.msra.mxu0 0
      %1880 = vmatprep.subr.bf16.mxu0 0
      %1881 = vmatpush1.bf16.msra.mxu0 0
      %1882 = vmatprep.mubr.bf16.mxu0 0
      %1883 = vmatmul.mubr.bf16.gmra.mrb[0].mxu0 %v1848
      %v1884 = vpop.f32.mrb[0].mxu0
      %v1885 = vadd.f32 %v1822, %v1884
      %v1886 = vpop.f32.mrb[0].mxu0
      %v1887 = vpop.f32.mrb[0].mxu0
      %v1888 = vadd.f32 %v1822, %v1887
      %v1889 = vpop.f32.mrb[0].mxu0
      %1890 = vdwg.mxu0
      %v1891 = vtanh.pop %v1885
      %v1892 = vtanh.pop %v1888
      %s1893 = scalar_lea.vmem %s2, 576
      %v1894 = vld [vmem:[%s1893] sm:$0xf]
      %v1895 = vld [vmem:[%s1893 + $0x4] sm:$0xf]
      %v1896 = vld [vmem:[%s1893 + $0x8] sm:$0xf]
      %v1897 = vld [vmem:[%s1893 + $0xc] sm:$0xf]
      %v1898 = vld [vmem:[%s1893 + $0x10] sm:$0xf]
      %v1899 = vld [vmem:[%s1893 + $0x14] sm:$0xf]
      %v1900 = vld [vmem:[%s1893 + $0x18] sm:$0xf]
      %v1901 = vld [vmem:[%s1893 + $0x1c] sm:$0xf]
      %v1902 = vpack.c.bf16 %v1892, %v1891
      %v1903 = vld [vmem:[%s3 + $0x9] sm:$0x1]
      %v1904 = vlaneseq
      %v1905 = vshrl.u32 %v1904, 7
      %v1906 = vsub.s32 0, %v1905
      %v1907 = vrot.slane %v1903, %v1906
      %v1916 = vunpack.c.l.b16 %v1894
      %v1917 = vunpack.c.l.b16 %v1895
      %v1918 = vunpack.c.l.b16 %v1896
      %v1919 = vunpack.c.l.b16 %v1897
      %v1920 = vunpack.c.l.b16 %v1898
      %v1921 = vunpack.c.l.b16 %v1899
      %v1922 = vunpack.c.l.b16 %v1900
      %v1923 = vunpack.c.l.b16 %v1901
      %v1924 = vpack.c.b16 %v1917, %v1916
      %v1925 = vpack.c.b16 %v1919, %v1918
      %v1926 = vpack.c.b16 %v1921, %v1920
      %v1927 = vpack.c.b16 %v1923, %v1922
      %v1933 = vsel %vm605, %v1902, 0
      %1935 = vmatprep.subr.bf16.mxu0 0
      %1936 = vmatpush1.bf16.msra.mxu0 %v1924
      %1937 = vmatprep.subr.bf16.mxu0 0
      %1938 = vmatpush1.bf16.msra.mxu0 %v1925
      %1939 = vmatprep.subr.bf16.mxu0 0
      %1940 = vmatpush1.bf16.msra.mxu0 %v1926
      %1941 = vmatprep.subr.bf16.mxu0 0
      %1942 = vmatpush1.bf16.msra.mxu0 %v1927
      %1943 = vmatprep.subr.bf16.mxu0 0
      %1944 = vmatpush1.bf16.msra.mxu0 0
      %1945 = vmatprep.subr.bf16.mxu0 0
      %1946 = vmatpush1.bf16.msra.mxu0 0
      %1947 = vmatprep.subr.bf16.mxu0 0
      %1948 = vmatpush1.bf16.msra.mxu0 0
      %1949 = vmatprep.subr.bf16.mxu0 0
      %1950 = vmatpush1.bf16.msra.mxu0 0
      %1951 = vmatprep.subr.bf16.mxu0 0
      %1952 = vmatpush1.bf16.msra.mxu0 0
      %1953 = vmatprep.subr.bf16.mxu0 0
      %1954 = vmatpush1.bf16.msra.mxu0 0
      %1955 = vmatprep.subr.bf16.mxu0 0
      %1956 = vmatpush1.bf16.msra.mxu0 0
      %1957 = vmatprep.subr.bf16.mxu0 0
      %1958 = vmatpush1.bf16.msra.mxu0 0
      %1959 = vmatprep.subr.bf16.mxu0 0
      %1960 = vmatpush1.bf16.msra.mxu0 0
      %1961 = vmatprep.subr.bf16.mxu0 0
      %1962 = vmatpush1.bf16.msra.mxu0 0
      %1963 = vmatprep.subr.bf16.mxu0 0
      %1964 = vmatpush1.bf16.msra.mxu0 0
      %1965 = vmatprep.subr.bf16.mxu0 0
      %1966 = vmatpush1.bf16.msra.mxu0 0
      %1967 = vmatprep.mubr.bf16.mxu0 0
      %1968 = vmatmul.mubr.bf16.gmra.mrb[0].mxu0 %v1933
      %v1969 = vpop.f32.mrb[0].mxu0
      %v1970 = vadd.f32 %v1907, %v1969
      %v1971 = vpop.f32.mrb[0].mxu0
      %v1972 = vpop.f32.mrb[0].mxu0
      %v1973 = vadd.f32 %v1907, %v1972
      %v1974 = vpop.f32.mrb[0].mxu0
      %1975 = vdwg.mxu0
      %vm1976 = vcmask 15360
      %v1977 = vsel %vm1976, %v1970, -inf
      %1978 = vmax.xlane.f32.xlu0 %v1977
      %v1979 = vpop.xlane.xlu0 %1978
      %v1980 = vsel %vm1976, %v1973, -inf
      %1981 = vmax.xlane.f32.xlu0 %v1980
      %v1982 = vpop.xlane.xlu0 %1981
      %v1983 = vsub.f32 %v1970, %v1979
      %v1984 = vsub.f32 %v1973, %v1982
      %v1985 = vmul.f32 %v1983, 1.442695
      %v1986 = vpow.pop %v1985
      %v1987 = vmul.f32 %v1984, 1.442695
      %v1988 = vpow.pop %v1987
      %v1989 = vsel %vm1976, %v1986, 0.0
      %1990 = vadd.xlane.f32.xlu0 %v1989
      %v1991 = vpop.xlane.xlu0 %1990
      %v1992 = vsel %vm1976, %v1988, 0.0
      %1993 = vadd.xlane.f32.xlu0 %v1992
      %v1994 = vpop.xlane.xlu0 %1993
      %v1995 = vrcp.pop %v1991
      %v1996 = vmul.f32 %v1986, %v1995
      %v1997 = vrcp.pop %v1994
      %v1998 = vmul.f32 %v1988, %v1997
      %1999 = vst.msk [vmem:[%s214] sm:$0xff] %vm1976, %v1996
      %2000 = vst.msk [vmem:[%s214 + $0x8] sm:$0xff] %vm1976, %v1998
      %p2001 = scmp.lt.s32.totalorder %s15, 3
      %s2002 = scalar_select %p2001, %s15, 3
      %s2003 = smul.addr %s2002, 2
      %s2004 = smul.addr %s2003, 8
      %s2005 = scalar_lea.vmem %s4, %s2004
      // Predicated region
      $region37: #{sage_res_forward.1} parent=35 // pred_check
        %p2006 = pneg %p127
      $region38: #{sage_res_forward.1} parent=35 // pred_check_branch
        %2008 = sbr.rel (%p2006) target = $region40
      $region39: #{sage_res_forward.1} parent=35 // pred_region
        _
      $region40: #{sage_res_forward.1} parent=35 // pred_fallthru
        _
    $region36: #{sage_res_forward.1} parent=5 // pred_fallthru
      _
    %p2009 = scmp.le.s32.totalorder 2, %s10
    // Predicated region
    $region41: #{sage_res_forward.1} parent=5 // pred_check
      %p2010 = pneg %p2009
    $region42: #{sage_res_forward.1} parent=5 // pred_check_branch
      %2012 = sbr.rel (%p2010) target = $region44
    $region43: #{sage_res_forward.1} parent=5 // pred_region
      %s2013 = ssub.s32 %s10, 2
      // Predicated region
      $region45: #{sage_res_forward.1} parent=43 // pred_check
        %p2014 = pneg %p133
      $region46: #{sage_res_forward.1} parent=43 // pred_check_branch
        %2016 = sbr.rel (%p2014) target = $region48
      $region47: #{sage_res_forward.1} parent=43 // pred_region
        %p2017 = scmp.lt.s32.totalorder %s16, 3
        %s2018 = scalar_select %p2017, %s16, 3
        %s2019 = smul.addr %s2018, 2
        %s2020 = smul.addr %s2019, 8
        %s2021 = scalar_lea.vmem %s4, %s2020
      $region48: #{sage_res_forward.1} parent=43 // pred_fallthru
        _
    $region44: #{sage_res_forward.1} parent=5 // pred_fallthru
      _
  $region6: #{sage_res_forward.1} parent=0 // loop_footer
    %s14 = sadd.s32 1, %s10
  $region7: #{sage_res_forward.1} parent=0 // loop_footer_branch
    %9 = sbr.rel target = $region3
  $region8: #{sage_res_forward.1} parent=0 // loop_exit
    _

</llo_original>
